<compile_context>
chip_gen: v7x
topology: tpu7x:2x2x1
jax: 0.10.0
libtpu: 0.0.40
codegen_flags: <defaults>
</compile_context>

<pallas_src>
import functools

import jax
import jax.numpy as jnp
from jax.experimental import pallas as pl
from jax.experimental.pallas import tpu as pltpu

# ---- problem sizes (small, consistent with the module) ----
STATE_DIM = 32
GOAL_DIM = 16
FEAT_DIM = STATE_DIM + GOAL_DIM
ACTION_DIM = 8
NUM_PRIM = 4          # len(models)
HID = 64
VF_DIM = 64           # latent_dim_vf
BATCH = 8
LEARN_LOG_STD = False

SLAB_W = 256          # lane width of the packed parameter slabs
OUT_W = 128           # lane-dense packed output: [mean | scale | value | pad]


def _relu(x):
    return jnp.maximum(x, 0.0)


# ----------------------------- Pallas kernel -----------------------------
def mcppo_kernel(state_ref, goal_ref, w_ref, b_ref, out_ref, *, woff, boff):
    dot = functools.partial(jnp.dot, preferred_element_type=jnp.float32)

    def W(name):
        r, nr, nc = woff[name]
        return w_ref[r:r + nr, :nc]

    def B(name):
        r, nc = boff[name]
        return b_ref[r:r + 1, :nc]

    state = state_ref[...]                 # (bs, STATE_DIM)
    goal = goal_ref[...]                   # (bs, GOAL_DIM)
    bs = state.shape[0]

    # --- state / goal encoders: Linear+ReLU, Linear+ReLU ---
    h = _relu(dot(state, W('sW1')) + B('sb1'))
    state_embed = _relu(dot(h, W('sW2')) + B('sb2'))

    h = _relu(dot(goal, W('gW1')) + B('gb1'))
    goal_embed = _relu(dot(h, W('gW2')) + B('gb2'))

    # --- gate: concat avoided by splitting W1 on the host ---
    h = _relu(dot(state_embed, W('tW1s')) + dot(goal_embed, W('tW1g')) + B('tb1'))
    weights = jax.nn.sigmoid(dot(h, W('tW2')) + B('tb2'))          # (bs, NUM_PRIM)

    # --- fused primitives: 3 wide matmuls instead of a 4-way unrolled loop ---
    h = jnp.tanh(dot(state, W('fW1')) + B('fb1'))                  # (bs, 256)
    h = jnp.tanh(dot(h, W('fW2')) + B('fb2'))                      # (bs, 256)
    mu_all = dot(h, W('fWa')) + B('fba')                           # (bs, NUM_PRIM*ACTION_DIM)

    # mixture: w_i/sigma_i expansion + group-of-8 reductions via tiny matmuls
    wos_all = dot(weights, W('Esig'))                              # (bs, NUM_PRIM*ACTION_DIM)
    denom = dot(wos_all, W('R'))                                   # (bs, ACTION_DIM)
    unnorm_mu = dot(wos_all * mu_all, W('R'))                      # (bs, ACTION_DIM)

    inv_denom = pl.reciprocal(denom, approx=True)                  # EUP, shared
    mean = unnorm_mu * inv_denom                                   # (bs, ACTION_DIM)
    scale = inv_denom                                              # scale_tril

    # --- critic: Linear(FEAT,64)+ReLU, Linear(64,64)+ReLU (split W1) ---
    h = _relu(dot(state, W('vW1s')) + dot(goal, W('vW1g')) + B('vb1'))
    value = _relu(dot(h, W('vW2')) + B('vb2'))                     # (bs, VF_DIM)

    # --- single lane-dense output store ---
    pad = jnp.zeros((bs, OUT_W - 2 * ACTION_DIM - VF_DIM), jnp.float32)
    out_ref[...] = jnp.concatenate([mean, scale, value, pad], axis=-1)


# ----------------------------- host-side parameter packing -----------------------------
def _block_diag(blocks):
    r = sum(b.shape[0] for b in blocks)
    c = sum(b.shape[1] for b in blocks)
    out = jnp.zeros((r, c), jnp.float32)
    ro = co = 0
    for b in blocks:
        out = out.at[ro:ro + b.shape[0], co:co + b.shape[1]].set(b.astype(jnp.float32))
        ro += b.shape[0]
        co += b.shape[1]
    return out


def pack_params(params):
    """Fuse primitives + split concat weights, then pack everything into
    one weight slab and one bias slab (done once, outside the kernel)."""
    (sW1, sb1, sW2, sb2, gW1, gb1, gW2, gb2, tW1, tb1, tW2, tb2,
     pW1, pb1, pW2, pb2, paW, pab, plogstd, vW1, vb1, vW2, vb2) = params

    # fused primitive weights / biases
    fW1 = jnp.concatenate([pW1[i] for i in range(NUM_PRIM)], axis=1)   # (32, 256)
    fW2 = _block_diag([pW2[i] for i in range(NUM_PRIM)])               # (256, 256)
    fWa = _block_diag([paW[i] for i in range(NUM_PRIM)])               # (256, 32)
    fb1 = pb1.reshape(-1)                                              # (256,)
    fb2 = pb2.reshape(-1)                                              # (256,)
    fba = pab.reshape(-1)                                              # (32,)

    # mixture helper matrices (log_std is frozen -> static fold)
    inv_sigma = jnp.exp(-plogstd)                                      # (NUM_PRIM, ACTION_DIM)
    Esig = _block_diag([inv_sigma[i][None, :] for i in range(NUM_PRIM)])  # (4, 32)
    R = jnp.tile(jnp.eye(ACTION_DIM, dtype=jnp.float32), (NUM_PRIM, 1))   # (32, 8)

    # split concat-consuming first layers
    tW1s, tW1g = tW1[:HID], tW1[HID:]
    vW1s, vW1g = vW1[:STATE_DIM], vW1[STATE_DIM:]

    wmats = [('sW1', sW1), ('sW2', sW2), ('gW1', gW1), ('gW2', gW2),
             ('tW1s', tW1s), ('tW1g', tW1g), ('tW2', tW2),
             ('fW1', fW1), ('fW2', fW2), ('fWa', fWa),
             ('Esig', Esig), ('R', R),
             ('vW1s', vW1s), ('vW1g', vW1g), ('vW2', vW2)]

    woff = {}
    blocks = []
    row = 0
    for name, m in wmats:
        m = jnp.asarray(m, jnp.float32)
        nr, nc = m.shape
        nr_pad = -(-nr // 8) * 8
        blk = jnp.zeros((nr_pad, SLAB_W), jnp.float32).at[:nr, :nc].set(m)
        blocks.append(blk)
        woff[name] = (row, nr, nc)
        row += nr_pad
    wslab = jnp.concatenate(blocks, axis=0)                            # (rows, 256)

    bvecs = [('sb1', sb1), ('sb2', sb2), ('gb1', gb1), ('gb2', gb2),
             ('tb1', tb1), ('tb2', tb2),
             ('fb1', fb1), ('fb2', fb2), ('fba', fba),
             ('vb1', vb1), ('vb2', vb2)]
    boff = {}
    brows = []
    for idx, (name, b) in enumerate(bvecs):
        b = jnp.asarray(b, jnp.float32).reshape(-1)
        brows.append(jnp.zeros((1, SLAB_W), jnp.float32).at[0, :b.shape[0]].set(b))
        boff[name] = (idx, b.shape[0])
    nb_pad = -(-len(bvecs) // 8) * 8
    if nb_pad > len(bvecs):
        brows.append(jnp.zeros((nb_pad - len(bvecs), SLAB_W), jnp.float32))
    bslab = jnp.concatenate(brows, axis=0)                             # (16, 256)

    return wslab, bslab, woff, boff


# ----------------------------- wrapper -----------------------------
def mcppo_forward(features, wslab, bslab, woff, boff):
    bs = features.shape[0]
    # split in the wrapper: avoids a lane-offset slice inside the kernel
    state = features[:, :STATE_DIM]
    goal = features[:, STATE_DIM:]

    vmem_spec = pl.BlockSpec(memory_space=pltpu.MemorySpace.VMEM)
    # NOTE: for realistic batch sizes, add a grid over the batch dim
    # (tile >=128 rows, dimension_semantics=("parallel",)) and bf16 matmul
    # inputs on v6e/v7x; at BATCH=8 a single grid-less call is latency-optimal.
    out = pl.pallas_call(
        functools.partial(mcppo_kernel, woff=woff, boff=boff),
        in_specs=[vmem_spec] * 4,
        out_specs=vmem_spec,
        out_shape=jax.ShapeDtypeStruct((bs, OUT_W), jnp.float32),
    )(state, goal, wslab, bslab)

    mean = out[:, :ACTION_DIM]
    scale_tril = out[:, ACTION_DIM:2 * ACTION_DIM]
    value = out[:, 2 * ACTION_DIM:2 * ACTION_DIM + VF_DIM]
    if LEARN_LOG_STD:
        return mean, value
    return (mean, scale_tril), value


# ----------------------------- parameter init -----------------------------
def init_params(key):
    """Deterministic synthetic weights; shapes follow MCPPOHiddenLayers.__init__."""
    ks = iter(jax.random.split(key, 64))

    def w(shape, scale=0.1):
        return jax.random.normal(next(ks), shape, jnp.float32) * scale

    params = [
        # state_encoder: Linear(STATE_DIM,64), Linear(64,64)
        w((STATE_DIM, HID)), w((1, HID)), w((HID, HID)), w((1, HID)),
        # goal_encoder: Linear(GOAL_DIM,64), Linear(64,64)
        w((GOAL_DIM, HID)), w((1, HID)), w((HID, HID)), w((1, HID)),
        # gate: Linear(128,64), Linear(64,NUM_PRIM)
        w((2 * HID, HID)), w((1, HID)), w((HID, NUM_PRIM)), w((1, NUM_PRIM)),
        # primitives (stacked over NUM_PRIM): mlp_extractor + action_net + log_std
        w((NUM_PRIM, STATE_DIM, HID)), w((NUM_PRIM, HID)),
        w((NUM_PRIM, HID, HID)), w((NUM_PRIM, HID)),
        w((NUM_PRIM, HID, ACTION_DIM)), w((NUM_PRIM, ACTION_DIM)),
        w((NUM_PRIM, ACTION_DIM)),                       # log_std
        # value_net: Linear(FEAT_DIM,64), Linear(64,64)
        w((FEAT_DIM, VF_DIM)), w((1, VF_DIM)), w((VF_DIM, VF_DIM)), w((1, VF_DIM)),
    ]
    return params


# ----------------------------- pure-JAX reference -----------------------------
def reference_forward(features, params):
    (sW1, sb1, sW2, sb2, gW1, gb1, gW2, gb2, tW1, tb1, tW2, tb2,
     pW1, pb1, pW2, pb2, paW, pab, plogstd, vW1, vb1, vW2, vb2) = params
    state = features[:, :STATE_DIM]
    goal = features[:, STATE_DIM:]
    relu = lambda x: jnp.maximum(x, 0.0)
    se = relu(relu(state @ sW1 + sb1) @ sW2 + sb2)
    ge = relu(relu(goal @ gW1 + gb1) @ gW2 + gb2)
    embed = jnp.concatenate([se, ge], -1)
    wts = jax.nn.sigmoid(relu(embed @ tW1 + tb1) @ tW2 + tb2)
    denom = jnp.zeros((features.shape[0], ACTION_DIM), jnp.float32)
    unnorm = jnp.zeros((features.shape[0], ACTION_DIM), jnp.float32)
    for i in range(NUM_PRIM):
        h = jnp.tanh(state @ pW1[i] + pb1[i])
        h = jnp.tanh(h @ pW2[i] + pb2[i])
        mu = h @ paW[i] + pab[i]
        sigma = jnp.exp(plogstd[i])[None, :]
        wos = wts[:, i:i + 1] / sigma
        denom = denom + wos
        unnorm = unnorm + wos * mu
    mean = unnorm / denom
    scale = 1.0 / denom
    value = relu(relu(features @ vW1 + vb1) @ vW2 + vb2)
    return (mean, scale), value


# ----------------------------- main -----------------------------
if __name__ == "__main__":
    key = jax.random.PRNGKey(0)
    k_feat, k_params = jax.random.split(key)
    features = jax.random.normal(k_feat, (BATCH, FEAT_DIM), jnp.float32)
    params = init_params(k_params)

    # one-time host-side packing (frozen weights -> static)
    wslab, bslab, woff, boff = pack_params(params)

    (mean, scale_tril), value = jax.block_until_ready(
        mcppo_forward(features, wslab, bslab, woff, boff))

    assert mean.shape == (BATCH, ACTION_DIM)
    assert scale_tril.shape == (BATCH, ACTION_DIM)
    assert value.shape == (BATCH, VF_DIM)

    # correctness check against the pure-JAX reference
    (mean_r, scale_r), value_r = reference_forward(features, params)
    assert jnp.allclose(mean, mean_r, rtol=1e-2, atol=1e-2)
    assert jnp.allclose(scale_tril, scale_r, rtol=1e-2, atol=1e-2)
    assert jnp.allclose(value, value_r, rtol=1e-2, atol=1e-2)

    print("KERNEL_OK")
</pallas_src>

<mosaic_0001>
module attributes {stable_mosaic.version = 11 : i64} {
  func.func @mcppo_kernel(%arg0: memref<8x32xf32, #tpu.memory_space<vmem>>, %arg1: memref<8x16xf32, #tpu.memory_space<vmem>>, %arg2: memref<1064x256xf32, #tpu.memory_space<vmem>>, %arg3: memref<16x256xf32, #tpu.memory_space<vmem>>, %arg4: memref<8x128xf32, #tpu.memory_space<vmem>>) attributes {dimension_semantics = [], scalar_prefetch = 0 : i64, scratch_operands = 0 : i64, tpu.core_type = #tpu.core_type<tc>} {
    %c0 = arith.constant 0 : index
    %c0_0 = arith.constant 0 : index
    %0 = vector.load %arg0[%c0, %c0_0] : memref<8x32xf32, #tpu.memory_space<vmem>>, vector<8x32xf32>
    %c0_1 = arith.constant 0 : index
    %c0_2 = arith.constant 0 : index
    %1 = vector.load %arg1[%c0_1, %c0_2] : memref<8x16xf32, #tpu.memory_space<vmem>>, vector<8x16xf32>
    %c0_3 = arith.constant 0 : index
    %c0_4 = arith.constant 0 : index
    %2 = vector.load %arg2[%c0_3, %c0_4] : memref<1064x256xf32, #tpu.memory_space<vmem>>, vector<32x64xf32>
    %cst = arith.constant dense<0.000000e+00> : vector<8x64xf32>
    %3 = tpu.matmul %0, %2, %cst {dimension_numbers = #tpu.dot_dimension_numbers<[1], [0], [0], [1], [0, 0, 1, 1], [], []>} : vector<8x32xf32>, vector<32x64xf32>, vector<8x64xf32> -> vector<8x64xf32>
    %c0_5 = arith.constant 0 : index
    %c0_6 = arith.constant 0 : index
    %4 = vector.load %arg3[%c0_5, %c0_6] : memref<16x256xf32, #tpu.memory_space<vmem>>, vector<1x64xf32>
    %5 = vector.broadcast %4 : vector<1x64xf32> to vector<8x64xf32>
    %6 = arith.addf %3, %5 : vector<8x64xf32>
    %cst_7 = arith.constant 0.000000e+00 : f32
    %7 = vector.broadcast %cst_7 : f32 to vector<8x64xf32>
    %8 = arith.maximumf %6, %7 : vector<8x64xf32>
    %c32 = arith.constant 32 : index
    %c0_8 = arith.constant 0 : index
    %9 = vector.load %arg2[%c32, %c0_8] : memref<1064x256xf32, #tpu.memory_space<vmem>>, vector<64x64xf32>
    %cst_9 = arith.constant dense<0.000000e+00> : vector<8x64xf32>
    %10 = tpu.matmul %8, %9, %cst_9 {dimension_numbers = #tpu.dot_dimension_numbers<[1], [0], [0], [1], [0, 0, 1, 1], [], []>} : vector<8x64xf32>, vector<64x64xf32>, vector<8x64xf32> -> vector<8x64xf32>
    %c1 = arith.constant 1 : index
    %c0_10 = arith.constant 0 : index
    %11 = vector.load %arg3[%c1, %c0_10] : memref<16x256xf32, #tpu.memory_space<vmem>>, vector<1x64xf32>
    %12 = vector.broadcast %11 : vector<1x64xf32> to vector<8x64xf32>
    %13 = arith.addf %10, %12 : vector<8x64xf32>
    %cst_11 = arith.constant 0.000000e+00 : f32
    %14 = vector.broadcast %cst_11 : f32 to vector<8x64xf32>
    %15 = arith.maximumf %13, %14 : vector<8x64xf32>
    %c96 = arith.constant 96 : index
    %c0_12 = arith.constant 0 : index
    %16 = vector.load %arg2[%c96, %c0_12] : memref<1064x256xf32, #tpu.memory_space<vmem>>, vector<16x64xf32>
    %cst_13 = arith.constant dense<0.000000e+00> : vector<8x64xf32>
    %17 = tpu.matmul %1, %16, %cst_13 {dimension_numbers = #tpu.dot_dimension_numbers<[1], [0], [0], [1], [0, 0, 1, 1], [], []>} : vector<8x16xf32>, vector<16x64xf32>, vector<8x64xf32> -> vector<8x64xf32>
    %c2 = arith.constant 2 : index
    %c0_14 = arith.constant 0 : index
    %18 = vector.load %arg3[%c2, %c0_14] : memref<16x256xf32, #tpu.memory_space<vmem>>, vector<1x64xf32>
    %19 = vector.broadcast %18 : vector<1x64xf32> to vector<8x64xf32>
    %20 = arith.addf %17, %19 : vector<8x64xf32>
    %cst_15 = arith.constant 0.000000e+00 : f32
    %21 = vector.broadcast %cst_15 : f32 to vector<8x64xf32>
    %22 = arith.maximumf %20, %21 : vector<8x64xf32>
    %c112 = arith.constant 112 : index
    %c0_16 = arith.constant 0 : index
    %23 = vector.load %arg2[%c112, %c0_16] : memref<1064x256xf32, #tpu.memory_space<vmem>>, vector<64x64xf32>
    %cst_17 = arith.constant dense<0.000000e+00> : vector<8x64xf32>
    %24 = tpu.matmul %22, %23, %cst_17 {dimension_numbers = #tpu.dot_dimension_numbers<[1], [0], [0], [1], [0, 0, 1, 1], [], []>} : vector<8x64xf32>, vector<64x64xf32>, vector<8x64xf32> -> vector<8x64xf32>
    %c3 = arith.constant 3 : index
    %c0_18 = arith.constant 0 : index
    %25 = vector.load %arg3[%c3, %c0_18] : memref<16x256xf32, #tpu.memory_space<vmem>>, vector<1x64xf32>
    %26 = vector.broadcast %25 : vector<1x64xf32> to vector<8x64xf32>
    %27 = arith.addf %24, %26 : vector<8x64xf32>
    %cst_19 = arith.constant 0.000000e+00 : f32
    %28 = vector.broadcast %cst_19 : f32 to vector<8x64xf32>
    %29 = arith.maximumf %27, %28 : vector<8x64xf32>
    %c176 = arith.constant 176 : index
    %c0_20 = arith.constant 0 : index
    %30 = vector.load %arg2[%c176, %c0_20] : memref<1064x256xf32, #tpu.memory_space<vmem>>, vector<64x64xf32>
    %cst_21 = arith.constant dense<0.000000e+00> : vector<8x64xf32>
    %31 = tpu.matmul %15, %30, %cst_21 {dimension_numbers = #tpu.dot_dimension_numbers<[1], [0], [0], [1], [0, 0, 1, 1], [], []>} : vector<8x64xf32>, vector<64x64xf32>, vector<8x64xf32> -> vector<8x64xf32>
    %c240 = arith.constant 240 : index
    %c0_22 = arith.constant 0 : index
    %32 = vector.load %arg2[%c240, %c0_22] : memref<1064x256xf32, #tpu.memory_space<vmem>>, vector<64x64xf32>
    %cst_23 = arith.constant dense<0.000000e+00> : vector<8x64xf32>
    %33 = tpu.matmul %29, %32, %cst_23 {dimension_numbers = #tpu.dot_dimension_numbers<[1], [0], [0], [1], [0, 0, 1, 1], [], []>} : vector<8x64xf32>, vector<64x64xf32>, vector<8x64xf32> -> vector<8x64xf32>
    %34 = arith.addf %31, %33 : vector<8x64xf32>
    %c4 = arith.constant 4 : index
    %c0_24 = arith.constant 0 : index
    %35 = vector.load %arg3[%c4, %c0_24] : memref<16x256xf32, #tpu.memory_space<vmem>>, vector<1x64xf32>
    %36 = vector.broadcast %35 : vector<1x64xf32> to vector<8x64xf32>
    %37 = arith.addf %34, %36 : vector<8x64xf32>
    %cst_25 = arith.constant 0.000000e+00 : f32
    %38 = vector.broadcast %cst_25 : f32 to vector<8x64xf32>
    %39 = arith.maximumf %37, %38 : vector<8x64xf32>
    %c304 = arith.constant 304 : index
    %c0_26 = arith.constant 0 : index
    %40 = vector.load %arg2[%c304, %c0_26] : memref<1064x256xf32, #tpu.memory_space<vmem>>, vector<64x4xf32>
    %cst_27 = arith.constant dense<0.000000e+00> : vector<8x4xf32>
    %41 = tpu.matmul %39, %40, %cst_27 {dimension_numbers = #tpu.dot_dimension_numbers<[1], [0], [0], [1], [0, 0, 1, 1], [], []>} : vector<8x64xf32>, vector<64x4xf32>, vector<8x4xf32> -> vector<8x4xf32>
    %c5 = arith.constant 5 : index
    %c0_28 = arith.constant 0 : index
    %42 = vector.load %arg3[%c5, %c0_28] : memref<16x256xf32, #tpu.memory_space<vmem>>, vector<1x4xf32>
    %43 = vector.broadcast %42 : vector<1x4xf32> to vector<8x4xf32>
    %44 = arith.addf %41, %43 : vector<8x4xf32>
    %45 = arith.negf %44 : vector<8x4xf32>
    %46 = math.exp %45 : vector<8x4xf32>
    %cst_29 = arith.constant 1.000000e+00 : f32
    %47 = vector.broadcast %cst_29 : f32 to vector<8x4xf32>
    %48 = arith.addf %47, %46 : vector<8x4xf32>
    %49 = arith.divf %47, %48 : vector<8x4xf32>
    %c368 = arith.constant 368 : index
    %c0_30 = arith.constant 0 : index
    %50 = vector.load %arg2[%c368, %c0_30] : memref<1064x256xf32, #tpu.memory_space<vmem>>, vector<32x256xf32>
    %cst_31 = arith.constant dense<0.000000e+00> : vector<8x256xf32>
    %51 = tpu.matmul %0, %50, %cst_31 {dimension_numbers = #tpu.dot_dimension_numbers<[1], [0], [0], [1], [0, 0, 1, 1], [], []>} : vector<8x32xf32>, vector<32x256xf32>, vector<8x256xf32> -> vector<8x256xf32>
    %c6 = arith.constant 6 : index
    %c0_32 = arith.constant 0 : index
    %52 = vector.load %arg3[%c6, %c0_32] : memref<16x256xf32, #tpu.memory_space<vmem>>, vector<1x256xf32>
    %53 = vector.broadcast %52 : vector<1x256xf32> to vector<8x256xf32>
    %54 = arith.addf %51, %53 : vector<8x256xf32>
    %55 = math.tanh %54 : vector<8x256xf32>
    %c400 = arith.constant 400 : index
    %c0_33 = arith.constant 0 : index
    %56 = vector.load %arg2[%c400, %c0_33] : memref<1064x256xf32, #tpu.memory_space<vmem>>, vector<256x256xf32>
    %cst_34 = arith.constant dense<0.000000e+00> : vector<8x256xf32>
    %57 = tpu.matmul %55, %56, %cst_34 {dimension_numbers = #tpu.dot_dimension_numbers<[1], [0], [0], [1], [0, 0, 1, 1], [], []>} : vector<8x256xf32>, vector<256x256xf32>, vector<8x256xf32> -> vector<8x256xf32>
    %c7 = arith.constant 7 : index
    %c0_35 = arith.constant 0 : index
    %58 = vector.load %arg3[%c7, %c0_35] : memref<16x256xf32, #tpu.memory_space<vmem>>, vector<1x256xf32>
    %59 = vector.broadcast %58 : vector<1x256xf32> to vector<8x256xf32>
    %60 = arith.addf %57, %59 : vector<8x256xf32>
    %61 = math.tanh %60 : vector<8x256xf32>
    %c656 = arith.constant 656 : index
    %c0_36 = arith.constant 0 : index
    %62 = vector.load %arg2[%c656, %c0_36] : memref<1064x256xf32, #tpu.memory_space<vmem>>, vector<256x32xf32>
    %cst_37 = arith.constant dense<0.000000e+00> : vector<8x32xf32>
    %63 = tpu.matmul %61, %62, %cst_37 {dimension_numbers = #tpu.dot_dimension_numbers<[1], [0], [0], [1], [0, 0, 1, 1], [], []>} : vector<8x256xf32>, vector<256x32xf32>, vector<8x32xf32> -> vector<8x32xf32>
    %c8 = arith.constant 8 : index
    %c0_38 = arith.constant 0 : index
    %64 = vector.load %arg3[%c8, %c0_38] : memref<16x256xf32, #tpu.memory_space<vmem>>, vector<1x32xf32>
    %65 = vector.broadcast %64 : vector<1x32xf32> to vector<8x32xf32>
    %66 = arith.addf %63, %65 : vector<8x32xf32>
    %c912 = arith.constant 912 : index
    %c0_39 = arith.constant 0 : index
    %67 = vector.load %arg2[%c912, %c0_39] : memref<1064x256xf32, #tpu.memory_space<vmem>>, vector<4x32xf32>
    %cst_40 = arith.constant dense<0.000000e+00> : vector<8x32xf32>
    %68 = tpu.matmul %49, %67, %cst_40 {dimension_numbers = #tpu.dot_dimension_numbers<[1], [0], [0], [1], [0, 0, 1, 1], [], []>} : vector<8x4xf32>, vector<4x32xf32>, vector<8x32xf32> -> vector<8x32xf32>
    %c920 = arith.constant 920 : index
    %c0_41 = arith.constant 0 : index
    %69 = vector.load %arg2[%c920, %c0_41] : memref<1064x256xf32, #tpu.memory_space<vmem>>, vector<32x8xf32>
    %cst_42 = arith.constant dense<0.000000e+00> : vector<8x8xf32>
    %70 = tpu.matmul %68, %69, %cst_42 {dimension_numbers = #tpu.dot_dimension_numbers<[1], [0], [0], [1], [0, 0, 1, 1], [], []>} : vector<8x32xf32>, vector<32x8xf32>, vector<8x8xf32> -> vector<8x8xf32>
    %71 = arith.mulf %68, %66 : vector<8x32xf32>
    %c920_43 = arith.constant 920 : index
    %c0_44 = arith.constant 0 : index
    %72 = vector.load %arg2[%c920_43, %c0_44] : memref<1064x256xf32, #tpu.memory_space<vmem>>, vector<32x8xf32>
    %cst_45 = arith.constant dense<0.000000e+00> : vector<8x8xf32>
    %73 = tpu.matmul %71, %72, %cst_45 {dimension_numbers = #tpu.dot_dimension_numbers<[1], [0], [0], [1], [0, 0, 1, 1], [], []>} : vector<8x32xf32>, vector<32x8xf32>, vector<8x8xf32> -> vector<8x8xf32>
    %74 = tpu.reciprocal %70 {approx = true} : vector<8x8xf32> -> vector<8x8xf32>
    %75 = arith.mulf %73, %74 : vector<8x8xf32>
    %c952 = arith.constant 952 : index
    %c0_46 = arith.constant 0 : index
    %76 = vector.load %arg2[%c952, %c0_46] : memref<1064x256xf32, #tpu.memory_space<vmem>>, vector<32x64xf32>
    %cst_47 = arith.constant dense<0.000000e+00> : vector<8x64xf32>
    %77 = tpu.matmul %0, %76, %cst_47 {dimension_numbers = #tpu.dot_dimension_numbers<[1], [0], [0], [1], [0, 0, 1, 1], [], []>} : vector<8x32xf32>, vector<32x64xf32>, vector<8x64xf32> -> vector<8x64xf32>
    %c984 = arith.constant 984 : index
    %c0_48 = arith.constant 0 : index
    %78 = vector.load %arg2[%c984, %c0_48] : memref<1064x256xf32, #tpu.memory_space<vmem>>, vector<16x64xf32>
    %cst_49 = arith.constant dense<0.000000e+00> : vector<8x64xf32>
    %79 = tpu.matmul %1, %78, %cst_49 {dimension_numbers = #tpu.dot_dimension_numbers<[1], [0], [0], [1], [0, 0, 1, 1], [], []>} : vector<8x16xf32>, vector<16x64xf32>, vector<8x64xf32> -> vector<8x64xf32>
    %80 = arith.addf %77, %79 : vector<8x64xf32>
    %c9 = arith.constant 9 : index
    %c0_50 = arith.constant 0 : index
    %81 = vector.load %arg3[%c9, %c0_50] : memref<16x256xf32, #tpu.memory_space<vmem>>, vector<1x64xf32>
    %82 = vector.broadcast %81 : vector<1x64xf32> to vector<8x64xf32>
    %83 = arith.addf %80, %82 : vector<8x64xf32>
    %cst_51 = arith.constant 0.000000e+00 : f32
    %84 = vector.broadcast %cst_51 : f32 to vector<8x64xf32>
    %85 = arith.maximumf %83, %84 : vector<8x64xf32>
    %c1000 = arith.constant 1000 : index
    %c0_52 = arith.constant 0 : index
    %86 = vector.load %arg2[%c1000, %c0_52] : memref<1064x256xf32, #tpu.memory_space<vmem>>, vector<64x64xf32>
    %cst_53 = arith.constant dense<0.000000e+00> : vector<8x64xf32>
    %87 = tpu.matmul %85, %86, %cst_53 {dimension_numbers = #tpu.dot_dimension_numbers<[1], [0], [0], [1], [0, 0, 1, 1], [], []>} : vector<8x64xf32>, vector<64x64xf32>, vector<8x64xf32> -> vector<8x64xf32>
    %c10 = arith.constant 10 : index
    %c0_54 = arith.constant 0 : index
    %88 = vector.load %arg3[%c10, %c0_54] : memref<16x256xf32, #tpu.memory_space<vmem>>, vector<1x64xf32>
    %89 = vector.broadcast %88 : vector<1x64xf32> to vector<8x64xf32>
    %90 = arith.addf %87, %89 : vector<8x64xf32>
    %cst_55 = arith.constant 0.000000e+00 : f32
    %91 = vector.broadcast %cst_55 : f32 to vector<8x64xf32>
    %92 = arith.maximumf %90, %91 : vector<8x64xf32>
    %cst_56 = arith.constant 0.000000e+00 : f32
    %93 = vector.broadcast %cst_56 : f32 to vector<8x48xf32>
    %94 = tpu.concatenate %75, %74, %92, %93 in 1 : vector<8x8xf32>, vector<8x8xf32>, vector<8x64xf32>, vector<8x48xf32> -> vector<8x128xf32>
    %c0_57 = arith.constant 0 : index
    %c0_58 = arith.constant 0 : index
    %95 = vector.load %arg4[%c0_57, %c0_58] : memref<8x128xf32, #tpu.memory_space<vmem>>, vector<8x128xf32>
    tpu.vector_store %arg4[%c0_57, %c0_58], %94 {strides = array<i32>} : memref<8x128xf32, #tpu.memory_space<vmem>>, vector<8x128xf32>,
    return
  }
}

</mosaic_0001>

<llo_original>
// kernel: tpu_custom_call.1
$region0: #{tpu_custom_call.1}
  #allocation0 [shape = 'u32[]', space=smem, size = 0x4, offset = 0x4, fixed_abs, tag = 'smem constant byte address 0x4 - core index']
  #allocation1 [shape = 'u32[144,128]{1,0:T(1,128)}', space=vmem, size = 0x12000, scoped, tag = 'internal scratch']
  %s0 = inlined_call_operand.hbm [shape: f32[8,32], index: 0, kind: input, shape index: {}]
  %s1 = inlined_call_operand.hbm [shape: f32[8,16], index: 1, kind: input, shape index: {}]
  %s2 = inlined_call_operand.hbm [shape: f32[1064,256], index: 2, kind: input, shape index: {}]
  %s3 = inlined_call_operand.hbm [shape: f32[16,256], index: 3, kind: input, shape index: {}]
  %s4 = inlined_call_operand.hbm [shape: f32[8,128], index: 4, kind: output, shape index: {}]
  %s5 = sld [smem:[#allocation0]]
  $region42: #{tpu_custom_call.1} parent=0
    _
  %s7 = ssub.s32 1, %s5
  %s8 = scalar_select 0, %s7, %s5
  $region1: #{tpu_custom_call.1} parent=0
    #allocation2 [shape = 'u8[4096]{0}', space=vmem, size = 0x1000, scoped, tag = 'input window, operand 0, single buffered']
    #allocation3 [shape = 's32[1]{0}', space=sflag, size = 0x4, scoped, tag = 'scoped memory for tpu_custom_call.1']
    #allocation4 [shape = 's32[1]{0}', space=sflag, size = 0x4, scoped, tag = 'scoped memory for tpu_custom_call.1']
    #allocation5 [shape = 'u8[4096]{0}', space=vmem, size = 0x1000, scoped, tag = 'input window, operand 1, single buffered']
    #allocation6 [shape = 's32[1]{0}', space=sflag, size = 0x4, scoped, tag = 'scoped memory for tpu_custom_call.1']
    #allocation7 [shape = 'u8[1089536]{0}', space=vmem, size = 0x10a000, scoped, tag = 'input window, operand 2, single buffered']
    #allocation8 [shape = 'u8[16384]{0}', space=vmem, size = 0x4000, scoped, tag = 'input window, operand 3, single buffered']
    #allocation9 [shape = 's32[1]{0}', space=sflag, size = 0x4, scoped, tag = 'scoped memory for tpu_custom_call.1']
    #allocation10 [shape = 'u8[4096]{0}', space=vmem, size = 0x1000, scoped, tag = 'output window, operand 0, single buffered']
    %9 = vsyncpa [#allocation3], 0
    %10 = vsyncpa [#allocation6], 0
    %11 = vsyncpa [#allocation9], 0
    %12 = vsyncpa [#allocation4], 0
    // Predicated region
    $region2: #{tpu_custom_call.1} parent=1 // pred_check
      _
    $region3: #{tpu_custom_call.1} parent=1 // pred_check_branch
      %14 = sbr.rel (0) target = $region5
    $region4: #{tpu_custom_call.1} parent=1 // pred_region
      %s16 = ssub.s32 128, 128
      %17 = vsyncadd [#allocation3], %s16
      %s19 = sshll.u32 [#allocation2], 4
      %s20 = int_to_ptr.vmem [resolvable:$true] %s19
      %22 = dma.hbm_to_vmem [thread:$0]  %s0, 128, %s20, [#allocation3]
    $region5: #{tpu_custom_call.1} parent=1 // pred_fallthru
      _
    // Predicated region
    $region6: #{tpu_custom_call.1} parent=1 // pred_check
      _
    $region7: #{tpu_custom_call.1} parent=1 // pred_check_branch
      %24 = sbr.rel (0) target = $region9
    $region8: #{tpu_custom_call.1} parent=1 // pred_region
      %s26 = ssub.s32 128, 128
      %27 = vsyncadd [#allocation6], %s26
      %s29 = sshll.u32 [#allocation5], 4
      %s30 = int_to_ptr.vmem [resolvable:$true] %s29
      %32 = dma.hbm_to_vmem [thread:$0]  %s1, 128, %s30, [#allocation6]
    $region9: #{tpu_custom_call.1} parent=1 // pred_fallthru
      _
    // Predicated region
    $region10: #{tpu_custom_call.1} parent=1 // pred_check
      _
    $region11: #{tpu_custom_call.1} parent=1 // pred_check_branch
      %34 = sbr.rel (0) target = $region13
    $region12: #{tpu_custom_call.1} parent=1 // pred_region
      %s36 = ssub.s32 34048, 34048
      %37 = vsyncadd [#allocation6], %s36
      %s38 = sshll.u32 [#allocation7], 4
      %s39 = int_to_ptr.vmem [resolvable:$true] %s38
      %44 = dma.hbm_to_vmem [thread:$0]  %s2, 34048, %s39, [#allocation6], 256, 256, 16
    $region13: #{tpu_custom_call.1} parent=1 // pred_fallthru
      _
    // Predicated region
    $region14: #{tpu_custom_call.1} parent=1 // pred_check
      _
    $region15: #{tpu_custom_call.1} parent=1 // pred_check_branch
      %46 = sbr.rel (0) target = $region17
    $region16: #{tpu_custom_call.1} parent=1 // pred_region
      %s48 = ssub.s32 512, 512
      %49 = vsyncadd [#allocation9], %s48
      %s50 = sshll.u32 [#allocation8], 4
      %s51 = int_to_ptr.vmem [resolvable:$true] %s50
      %56 = dma.hbm_to_vmem [thread:$0]  %s3, 512, %s51, [#allocation9], 256, 256, 16
    $region17: #{tpu_custom_call.1} parent=1 // pred_fallthru
      _
    // Predicated region
    $region18: #{tpu_custom_call.1} parent=1 // pred_check
      _
    $region19: #{tpu_custom_call.1} parent=1 // pred_check_branch
      %58 = sbr.rel (0) target = $region21
    $region20: #{tpu_custom_call.1} parent=1 // pred_region
      %59 = dma.done [#allocation3], 128
    $region21: #{tpu_custom_call.1} parent=1 // pred_fallthru
      _
    // Predicated region
    $region22: #{tpu_custom_call.1} parent=1 // pred_check
      _
    $region23: #{tpu_custom_call.1} parent=1 // pred_check_branch
      %61 = sbr.rel (0) target = $region25
    $region24: #{tpu_custom_call.1} parent=1 // pred_region
      %62 = dma.done [#allocation6], 128
    $region25: #{tpu_custom_call.1} parent=1 // pred_fallthru
      _
    // Predicated region
    $region26: #{tpu_custom_call.1} parent=1 // pred_check
      _
    $region27: #{tpu_custom_call.1} parent=1 // pred_check_branch
      %64 = sbr.rel (0) target = $region29
    $region28: #{tpu_custom_call.1} parent=1 // pred_region
      %65 = dma.done [#allocation6], 34048
    $region29: #{tpu_custom_call.1} parent=1 // pred_fallthru
      _
    // Predicated region
    $region30: #{tpu_custom_call.1} parent=1 // pred_check
      _
    $region31: #{tpu_custom_call.1} parent=1 // pred_check_branch
      %67 = sbr.rel (0) target = $region33
    $region32: #{tpu_custom_call.1} parent=1 // pred_region
      %68 = dma.done [#allocation9], 512
    $region33: #{tpu_custom_call.1} parent=1 // pred_fallthru
      _
    %v69 = vld [vmem:[#allocation2] sm:$0xff]
    %v70 = vld [vmem:[#allocation5] sm:$0xff]
    %v71 = vld [vmem:[#allocation7] sm:$0xff]
    %v72 = vld [vmem:[#allocation7 + $0x10] sm:$0xff]
    %v73 = vld [vmem:[#allocation7 + $0x20] sm:$0xff]
    %v74 = vld [vmem:[#allocation7 + $0x30] sm:$0xff]
    %v75 = vld [vmem:[#allocation8] ss:$0 sm:$0xff]
    %vm76 = vcmask 261120
    %v78 = vsel %vm76, %v69, 0
    %80 = vmatprep.subr.mxu0 0.0
    %81 = vmatpush1.msra.mxu0 %v71
    %82 = vmatprep.subr.mxu0 0.0
    %83 = vmatpush1.msra.mxu0 %v72
    %84 = vmatprep.subr.mxu0 0.0
    %85 = vmatpush1.msra.mxu0 %v73
    %86 = vmatprep.subr.mxu0 0.0
    %87 = vmatpush1.msra.mxu0 %v74
    %88 = vmatprep.subr.mxu0 0.0
    %89 = vmatpush1.msra.mxu0 0.0
    %90 = vmatprep.subr.mxu0 0.0
    %91 = vmatpush1.msra.mxu0 0.0
    %92 = vmatprep.subr.mxu0 0.0
    %93 = vmatpush1.msra.mxu0 0.0
    %94 = vmatprep.subr.mxu0 0.0
    %95 = vmatpush1.msra.mxu0 0.0
    %96 = vmatprep.subr.mxu0 0.0
    %97 = vmatpush1.msra.mxu0 0.0
    %98 = vmatprep.subr.mxu0 0.0
    %99 = vmatpush1.msra.mxu0 0.0
    %100 = vmatprep.subr.mxu0 0.0
    %101 = vmatpush1.msra.mxu0 0.0
    %102 = vmatprep.subr.mxu0 0.0
    %103 = vmatpush1.msra.mxu0 0.0
    %104 = vmatprep.subr.mxu0 0.0
    %105 = vmatpush1.msra.mxu0 0.0
    %106 = vmatprep.subr.mxu0 0.0
    %107 = vmatpush1.msra.mxu0 0.0
    %108 = vmatprep.subr.mxu0 0.0
    %109 = vmatpush1.msra.mxu0 0.0
    %110 = vmatprep.subr.mxu0 0.0
    %111 = vmatpush1.msra.mxu0 0.0
    %112 = vmatprep.subr.mxu0 0.0
    %113 = vmatpush1.msra.mxu0 0.0
    %114 = vmatprep.subr.mxu0 0.0
    %115 = vmatpush1.msra.mxu0 0.0
    %116 = vmatprep.subr.mxu0 0.0
    %117 = vmatpush1.msra.mxu0 0.0
    %118 = vmatprep.subr.mxu0 0.0
    %119 = vmatpush1.msra.mxu0 0.0
    %120 = vmatprep.subr.mxu0 0.0
    %121 = vmatpush1.msra.mxu0 0.0
    %122 = vmatprep.subr.mxu0 0.0
    %123 = vmatpush1.msra.mxu0 0.0
    %124 = vmatprep.subr.mxu0 0.0
    %125 = vmatpush1.msra.mxu0 0.0
    %126 = vmatprep.subr.mxu0 0.0
    %127 = vmatpush1.msra.mxu0 0.0
    %128 = vmatprep.subr.mxu0 0.0
    %129 = vmatpush1.msra.mxu0 0.0
    %130 = vmatprep.subr.mxu0 0.0
    %131 = vmatpush1.msra.mxu0 0.0
    %132 = vmatprep.subr.mxu0 0.0
    %133 = vmatpush1.msra.mxu0 0.0
    %134 = vmatprep.subr.mxu0 0.0
    %135 = vmatpush1.msra.mxu0 0.0
    %136 = vmatprep.subr.mxu0 0.0
    %137 = vmatpush1.msra.mxu0 0.0
    %138 = vmatprep.subr.mxu0 0.0
    %139 = vmatpush1.msra.mxu0 0.0
    %140 = vmatprep.subr.mxu0 0.0
    %141 = vmatpush1.msra.mxu0 0.0
    %142 = vmatprep.subr.mxu0 0.0
    %143 = vmatpush1.msra.mxu0 0.0
    %144 = vmatprep.mubr.f32.mxu0 0.0
    %145 = vmatmul.mubr.f32.gmra.mrb[0].mxu0 %v78
    %v146 = vpop.f32.mrb[0].mxu0
    %v147 = vadd.f32 %v75, %v146
    %v148 = vpop.f32.mrb[0].mxu0
    %149 = vdwg.mxu0
    %v150 = vmax.f32 %v147, 0.0
    %v151 = vld [vmem:[#allocation7 + $0x40] sm:$0xff]
    %v152 = vld [vmem:[#allocation7 + $0x50] sm:$0xff]
    %v153 = vld [vmem:[#allocation7 + $0x60] sm:$0xff]
    %v154 = vld [vmem:[#allocation7 + $0x70] sm:$0xff]
    %v155 = vld [vmem:[#allocation7 + $0x80] sm:$0xff]
    %v156 = vld [vmem:[#allocation7 + $0x90] sm:$0xff]
    %v157 = vld [vmem:[#allocation7 + $0xa0] sm:$0xff]
    %v158 = vld [vmem:[#allocation7 + $0xb0] sm:$0xff]
    %v159 = vld [vmem:[#allocation8 + $0x1] ss:$0 sm:$0xff]
    %vm160 = vcmask 523264
    %v162 = vsel %vm160, %v150, 0
    %164 = vmatprep.subr.mxu0 0.0
    %165 = vmatpush1.msra.mxu0 %v151
    %166 = vmatprep.subr.mxu0 0.0
    %167 = vmatpush1.msra.mxu0 %v152
    %168 = vmatprep.subr.mxu0 0.0
    %169 = vmatpush1.msra.mxu0 %v153
    %170 = vmatprep.subr.mxu0 0.0
    %171 = vmatpush1.msra.mxu0 %v154
    %172 = vmatprep.subr.mxu0 0.0
    %173 = vmatpush1.msra.mxu0 %v155
    %174 = vmatprep.subr.mxu0 0.0
    %175 = vmatpush1.msra.mxu0 %v156
    %176 = vmatprep.subr.mxu0 0.0
    %177 = vmatpush1.msra.mxu0 %v157
    %178 = vmatprep.subr.mxu0 0.0
    %179 = vmatpush1.msra.mxu0 %v158
    %180 = vmatprep.subr.mxu0 0.0
    %181 = vmatpush1.msra.mxu0 0.0
    %182 = vmatprep.subr.mxu0 0.0
    %183 = vmatpush1.msra.mxu0 0.0
    %184 = vmatprep.subr.mxu0 0.0
    %185 = vmatpush1.msra.mxu0 0.0
    %186 = vmatprep.subr.mxu0 0.0
    %187 = vmatpush1.msra.mxu0 0.0
    %188 = vmatprep.subr.mxu0 0.0
    %189 = vmatpush1.msra.mxu0 0.0
    %190 = vmatprep.subr.mxu0 0.0
    %191 = vmatpush1.msra.mxu0 0.0
    %192 = vmatprep.subr.mxu0 0.0
    %193 = vmatpush1.msra.mxu0 0.0
    %194 = vmatprep.subr.mxu0 0.0
    %195 = vmatpush1.msra.mxu0 0.0
    %196 = vmatprep.subr.mxu0 0.0
    %197 = vmatpush1.msra.mxu0 0.0
    %198 = vmatprep.subr.mxu0 0.0
    %199 = vmatpush1.msra.mxu0 0.0
    %200 = vmatprep.subr.mxu0 0.0
    %201 = vmatpush1.msra.mxu0 0.0
    %202 = vmatprep.subr.mxu0 0.0
    %203 = vmatpush1.msra.mxu0 0.0
    %204 = vmatprep.subr.mxu0 0.0
    %205 = vmatpush1.msra.mxu0 0.0
    %206 = vmatprep.subr.mxu0 0.0
    %207 = vmatpush1.msra.mxu0 0.0
    %208 = vmatprep.subr.mxu0 0.0
    %209 = vmatpush1.msra.mxu0 0.0
    %210 = vmatprep.subr.mxu0 0.0
    %211 = vmatpush1.msra.mxu0 0.0
    %212 = vmatprep.subr.mxu0 0.0
    %213 = vmatpush1.msra.mxu0 0.0
    %214 = vmatprep.subr.mxu0 0.0
    %215 = vmatpush1.msra.mxu0 0.0
    %216 = vmatprep.subr.mxu0 0.0
    %217 = vmatpush1.msra.mxu0 0.0
    %218 = vmatprep.subr.mxu0 0.0
    %219 = vmatpush1.msra.mxu0 0.0
    %220 = vmatprep.subr.mxu0 0.0
    %221 = vmatpush1.msra.mxu0 0.0
    %222 = vmatprep.subr.mxu0 0.0
    %223 = vmatpush1.msra.mxu0 0.0
    %224 = vmatprep.subr.mxu0 0.0
    %225 = vmatpush1.msra.mxu0 0.0
    %226 = vmatprep.subr.mxu0 0.0
    %227 = vmatpush1.msra.mxu0 0.0
    %228 = vmatprep.mubr.f32.mxu0 0.0
    %229 = vmatmul.mubr.f32.gmra.mrb[0].mxu0 %v162
    %v230 = vpop.f32.mrb[0].mxu0
    %v231 = vadd.f32 %v159, %v230
    %v232 = vpop.f32.mrb[0].mxu0
    %233 = vdwg.mxu0
    %v234 = vmax.f32 %v231, 0.0
    %v235 = vld [vmem:[#allocation7 + $0xc0] sm:$0xff]
    %v236 = vld [vmem:[#allocation7 + $0xd0] sm:$0xff]
    %v237 = vld [vmem:[#allocation8 + $0x2] ss:$0 sm:$0xff]
    %vm238 = vcmask 130048
    %v240 = vsel %vm238, %v70, 0
    %242 = vmatprep.subr.mxu0 0.0
    %243 = vmatpush1.msra.mxu0 %v235
    %244 = vmatprep.subr.mxu0 0.0
    %245 = vmatpush1.msra.mxu0 %v236
    %246 = vmatprep.subr.mxu0 0.0
    %247 = vmatpush1.msra.mxu0 0.0
    %248 = vmatprep.subr.mxu0 0.0
    %249 = vmatpush1.msra.mxu0 0.0
    %250 = vmatprep.subr.mxu0 0.0
    %251 = vmatpush1.msra.mxu0 0.0
    %252 = vmatprep.subr.mxu0 0.0
    %253 = vmatpush1.msra.mxu0 0.0
    %254 = vmatprep.subr.mxu0 0.0
    %255 = vmatpush1.msra.mxu0 0.0
    %256 = vmatprep.subr.mxu0 0.0
    %257 = vmatpush1.msra.mxu0 0.0
    %258 = vmatprep.subr.mxu0 0.0
    %259 = vmatpush1.msra.mxu0 0.0
    %260 = vmatprep.subr.mxu0 0.0
    %261 = vmatpush1.msra.mxu0 0.0
    %262 = vmatprep.subr.mxu0 0.0
    %263 = vmatpush1.msra.mxu0 0.0
    %264 = vmatprep.subr.mxu0 0.0
    %265 = vmatpush1.msra.mxu0 0.0
    %266 = vmatprep.subr.mxu0 0.0
    %267 = vmatpush1.msra.mxu0 0.0
    %268 = vmatprep.subr.mxu0 0.0
    %269 = vmatpush1.msra.mxu0 0.0
    %270 = vmatprep.subr.mxu0 0.0
    %271 = vmatpush1.msra.mxu0 0.0
    %272 = vmatprep.subr.mxu0 0.0
    %273 = vmatpush1.msra.mxu0 0.0
    %274 = vmatprep.subr.mxu0 0.0
    %275 = vmatpush1.msra.mxu0 0.0
    %276 = vmatprep.subr.mxu0 0.0
    %277 = vmatpush1.msra.mxu0 0.0
    %278 = vmatprep.subr.mxu0 0.0
    %279 = vmatpush1.msra.mxu0 0.0
    %280 = vmatprep.subr.mxu0 0.0
    %281 = vmatpush1.msra.mxu0 0.0
    %282 = vmatprep.subr.mxu0 0.0
    %283 = vmatpush1.msra.mxu0 0.0
    %284 = vmatprep.subr.mxu0 0.0
    %285 = vmatpush1.msra.mxu0 0.0
    %286 = vmatprep.subr.mxu0 0.0
    %287 = vmatpush1.msra.mxu0 0.0
    %288 = vmatprep.subr.mxu0 0.0
    %289 = vmatpush1.msra.mxu0 0.0
    %290 = vmatprep.subr.mxu0 0.0
    %291 = vmatpush1.msra.mxu0 0.0
    %292 = vmatprep.subr.mxu0 0.0
    %293 = vmatpush1.msra.mxu0 0.0
    %294 = vmatprep.subr.mxu0 0.0
    %295 = vmatpush1.msra.mxu0 0.0
    %296 = vmatprep.subr.mxu0 0.0
    %297 = vmatpush1.msra.mxu0 0.0
    %298 = vmatprep.subr.mxu0 0.0
    %299 = vmatpush1.msra.mxu0 0.0
    %300 = vmatprep.subr.mxu0 0.0
    %301 = vmatpush1.msra.mxu0 0.0
    %302 = vmatprep.subr.mxu0 0.0
    %303 = vmatpush1.msra.mxu0 0.0
    %304 = vmatprep.subr.mxu0 0.0
    %305 = vmatpush1.msra.mxu0 0.0
    %306 = vmatprep.mubr.f32.mxu0 0.0
    %307 = vmatmul.mubr.f32.gmra.mrb[0].mxu0 %v240
    %v308 = vpop.f32.mrb[0].mxu0
    %v309 = vadd.f32 %v237, %v308
    %v310 = vpop.f32.mrb[0].mxu0
    %311 = vdwg.mxu0
    %v312 = vmax.f32 %v309, 0.0
    %v313 = vld [vmem:[#allocation7 + $0xe0] sm:$0xff]
    %v314 = vld [vmem:[#allocation7 + $0xf0] sm:$0xff]
    %v315 = vld [vmem:[#allocation7 + $0x100] sm:$0xff]
    %v316 = vld [vmem:[#allocation7 + $0x110] sm:$0xff]
    %v317 = vld [vmem:[#allocation7 + $0x120] sm:$0xff]
    %v318 = vld [vmem:[#allocation7 + $0x130] sm:$0xff]
    %v319 = vld [vmem:[#allocation7 + $0x140] sm:$0xff]
    %v320 = vld [vmem:[#allocation7 + $0x150] sm:$0xff]
    %v321 = vld [vmem:[#allocation8 + $0x3] ss:$0 sm:$0xff]
    %v323 = vsel %vm160, %v312, 0
    %325 = vmatprep.subr.mxu0 0.0
    %326 = vmatpush1.msra.mxu0 %v313
    %327 = vmatprep.subr.mxu0 0.0
    %328 = vmatpush1.msra.mxu0 %v314
    %329 = vmatprep.subr.mxu0 0.0
    %330 = vmatpush1.msra.mxu0 %v315
    %331 = vmatprep.subr.mxu0 0.0
    %332 = vmatpush1.msra.mxu0 %v316
    %333 = vmatprep.subr.mxu0 0.0
    %334 = vmatpush1.msra.mxu0 %v317
    %335 = vmatprep.subr.mxu0 0.0
    %336 = vmatpush1.msra.mxu0 %v318
    %337 = vmatprep.subr.mxu0 0.0
    %338 = vmatpush1.msra.mxu0 %v319
    %339 = vmatprep.subr.mxu0 0.0
    %340 = vmatpush1.msra.mxu0 %v320
    %341 = vmatprep.subr.mxu0 0.0
    %342 = vmatpush1.msra.mxu0 0.0
    %343 = vmatprep.subr.mxu0 0.0
    %344 = vmatpush1.msra.mxu0 0.0
    %345 = vmatprep.subr.mxu0 0.0
    %346 = vmatpush1.msra.mxu0 0.0
    %347 = vmatprep.subr.mxu0 0.0
    %348 = vmatpush1.msra.mxu0 0.0
    %349 = vmatprep.subr.mxu0 0.0
    %350 = vmatpush1.msra.mxu0 0.0
    %351 = vmatprep.subr.mxu0 0.0
    %352 = vmatpush1.msra.mxu0 0.0
    %353 = vmatprep.subr.mxu0 0.0
    %354 = vmatpush1.msra.mxu0 0.0
    %355 = vmatprep.subr.mxu0 0.0
    %356 = vmatpush1.msra.mxu0 0.0
    %357 = vmatprep.subr.mxu0 0.0
    %358 = vmatpush1.msra.mxu0 0.0
    %359 = vmatprep.subr.mxu0 0.0
    %360 = vmatpush1.msra.mxu0 0.0
    %361 = vmatprep.subr.mxu0 0.0
    %362 = vmatpush1.msra.mxu0 0.0
    %363 = vmatprep.subr.mxu0 0.0
    %364 = vmatpush1.msra.mxu0 0.0
    %365 = vmatprep.subr.mxu0 0.0
    %366 = vmatpush1.msra.mxu0 0.0
    %367 = vmatprep.subr.mxu0 0.0
    %368 = vmatpush1.msra.mxu0 0.0
    %369 = vmatprep.subr.mxu0 0.0
    %370 = vmatpush1.msra.mxu0 0.0
    %371 = vmatprep.subr.mxu0 0.0
    %372 = vmatpush1.msra.mxu0 0.0
    %373 = vmatprep.subr.mxu0 0.0
    %374 = vmatpush1.msra.mxu0 0.0
    %375 = vmatprep.subr.mxu0 0.0
    %376 = vmatpush1.msra.mxu0 0.0
    %377 = vmatprep.subr.mxu0 0.0
    %378 = vmatpush1.msra.mxu0 0.0
    %379 = vmatprep.subr.mxu0 0.0
    %380 = vmatpush1.msra.mxu0 0.0
    %381 = vmatprep.subr.mxu0 0.0
    %382 = vmatpush1.msra.mxu0 0.0
    %383 = vmatprep.subr.mxu0 0.0
    %384 = vmatpush1.msra.mxu0 0.0
    %385 = vmatprep.subr.mxu0 0.0
    %386 = vmatpush1.msra.mxu0 0.0
    %387 = vmatprep.subr.mxu0 0.0
    %388 = vmatpush1.msra.mxu0 0.0
    %389 = vmatprep.mubr.f32.mxu0 0.0
    %390 = vmatmul.mubr.f32.gmra.mrb[0].mxu0 %v323
    %v391 = vpop.f32.mrb[0].mxu0
    %v392 = vadd.f32 %v321, %v391
    %v393 = vpop.f32.mrb[0].mxu0
    %394 = vdwg.mxu0
    %v395 = vmax.f32 %v392, 0.0
    %v396 = vld [vmem:[#allocation7 + $0x160] sm:$0xff]
    %v397 = vld [vmem:[#allocation7 + $0x170] sm:$0xff]
    %v398 = vld [vmem:[#allocation7 + $0x180] sm:$0xff]
    %v399 = vld [vmem:[#allocation7 + $0x190] sm:$0xff]
    %v400 = vld [vmem:[#allocation7 + $0x1a0] sm:$0xff]
    %v401 = vld [vmem:[#allocation7 + $0x1b0] sm:$0xff]
    %v402 = vld [vmem:[#allocation7 + $0x1c0] sm:$0xff]
    %v403 = vld [vmem:[#allocation7 + $0x1d0] sm:$0xff]
    %v404 = vld [vmem:[#allocation7 + $0x1e0] sm:$0xff]
    %v405 = vld [vmem:[#allocation7 + $0x1f0] sm:$0xff]
    %v406 = vld [vmem:[#allocation7 + $0x200] sm:$0xff]
    %v407 = vld [vmem:[#allocation7 + $0x210] sm:$0xff]
    %v408 = vld [vmem:[#allocation7 + $0x220] sm:$0xff]
    %v409 = vld [vmem:[#allocation7 + $0x230] sm:$0xff]
    %v410 = vld [vmem:[#allocation7 + $0x240] sm:$0xff]
    %v411 = vld [vmem:[#allocation7 + $0x250] sm:$0xff]
    %v413 = vsel %vm160, %v395, 0
    %415 = vmatprep.subr.mxu0 0.0
    %416 = vmatpush1.msra.mxu0 %v404
    %417 = vmatprep.subr.mxu0 0.0
    %418 = vmatpush1.msra.mxu0 %v405
    %419 = vmatprep.subr.mxu0 0.0
    %420 = vmatpush1.msra.mxu0 %v406
    %421 = vmatprep.subr.mxu0 0.0
    %422 = vmatpush1.msra.mxu0 %v407
    %423 = vmatprep.subr.mxu0 0.0
    %424 = vmatpush1.msra.mxu0 %v408
    %425 = vmatprep.subr.mxu0 0.0
    %426 = vmatpush1.msra.mxu0 %v409
    %427 = vmatprep.subr.mxu0 0.0
    %428 = vmatpush1.msra.mxu0 %v410
    %429 = vmatprep.subr.mxu0 0.0
    %430 = vmatpush1.msra.mxu0 %v411
    %431 = vmatprep.subr.mxu0 0.0
    %432 = vmatpush1.msra.mxu0 0.0
    %433 = vmatprep.subr.mxu0 0.0
    %434 = vmatpush1.msra.mxu0 0.0
    %435 = vmatprep.subr.mxu0 0.0
    %436 = vmatpush1.msra.mxu0 0.0
    %437 = vmatprep.subr.mxu0 0.0
    %438 = vmatpush1.msra.mxu0 0.0
    %439 = vmatprep.subr.mxu0 0.0
    %440 = vmatpush1.msra.mxu0 0.0
    %441 = vmatprep.subr.mxu0 0.0
    %442 = vmatpush1.msra.mxu0 0.0
    %443 = vmatprep.subr.mxu0 0.0
    %444 = vmatpush1.msra.mxu0 0.0
    %445 = vmatprep.subr.mxu0 0.0
    %446 = vmatpush1.msra.mxu0 0.0
    %447 = vmatprep.subr.mxu0 0.0
    %448 = vmatpush1.msra.mxu0 0.0
    %449 = vmatprep.subr.mxu0 0.0
    %450 = vmatpush1.msra.mxu0 0.0
    %451 = vmatprep.subr.mxu0 0.0
    %452 = vmatpush1.msra.mxu0 0.0
    %453 = vmatprep.subr.mxu0 0.0
    %454 = vmatpush1.msra.mxu0 0.0
    %455 = vmatprep.subr.mxu0 0.0
    %456 = vmatpush1.msra.mxu0 0.0
    %457 = vmatprep.subr.mxu0 0.0
    %458 = vmatpush1.msra.mxu0 0.0
    %459 = vmatprep.subr.mxu0 0.0
    %460 = vmatpush1.msra.mxu0 0.0
    %461 = vmatprep.subr.mxu0 0.0
    %462 = vmatpush1.msra.mxu0 0.0
    %463 = vmatprep.subr.mxu0 0.0
    %464 = vmatpush1.msra.mxu0 0.0
    %465 = vmatprep.subr.mxu0 0.0
    %466 = vmatpush1.msra.mxu0 0.0
    %467 = vmatprep.subr.mxu0 0.0
    %468 = vmatpush1.msra.mxu0 0.0
    %469 = vmatprep.subr.mxu0 0.0
    %470 = vmatpush1.msra.mxu0 0.0
    %471 = vmatprep.subr.mxu0 0.0
    %472 = vmatpush1.msra.mxu0 0.0
    %473 = vmatprep.subr.mxu0 0.0
    %474 = vmatpush1.msra.mxu0 0.0
    %475 = vmatprep.subr.mxu0 0.0
    %476 = vmatpush1.msra.mxu0 0.0
    %477 = vmatprep.subr.mxu0 0.0
    %478 = vmatpush1.msra.mxu0 0.0
    %479 = vmatprep.mubr.f32.mxu0 0.0
    %480 = vmatmul.mubr.f32.gmra.mrb[0].mxu0 %v413
    %v481 = vpop.f32.mrb[0].mxu0
    %v482 = vadd.f32 0.0, %v481
    %v483 = vpop.f32.mrb[0].mxu0
    %484 = vdwg.mxu0
    %v486 = vsel %vm160, %v234, 0
    %488 = vmatprep.subr.mxu0 0.0
    %489 = vmatpush1.msra.mxu0 %v396
    %490 = vmatprep.subr.mxu0 0.0
    %491 = vmatpush1.msra.mxu0 %v397
    %492 = vmatprep.subr.mxu0 0.0
    %493 = vmatpush1.msra.mxu0 %v398
    %494 = vmatprep.subr.mxu0 0.0
    %495 = vmatpush1.msra.mxu0 %v399
    %496 = vmatprep.subr.mxu0 0.0
    %497 = vmatpush1.msra.mxu0 %v400
    %498 = vmatprep.subr.mxu0 0.0
    %499 = vmatpush1.msra.mxu0 %v401
    %500 = vmatprep.subr.mxu0 0.0
    %501 = vmatpush1.msra.mxu0 %v402
    %502 = vmatprep.subr.mxu0 0.0
    %503 = vmatpush1.msra.mxu0 %v403
    %504 = vmatprep.subr.mxu0 0.0
    %505 = vmatpush1.msra.mxu0 0.0
    %506 = vmatprep.subr.mxu0 0.0
    %507 = vmatpush1.msra.mxu0 0.0
    %508 = vmatprep.subr.mxu0 0.0
    %509 = vmatpush1.msra.mxu0 0.0
    %510 = vmatprep.subr.mxu0 0.0
    %511 = vmatpush1.msra.mxu0 0.0
    %512 = vmatprep.subr.mxu0 0.0
    %513 = vmatpush1.msra.mxu0 0.0
    %514 = vmatprep.subr.mxu0 0.0
    %515 = vmatpush1.msra.mxu0 0.0
    %516 = vmatprep.subr.mxu0 0.0
    %517 = vmatpush1.msra.mxu0 0.0
    %518 = vmatprep.subr.mxu0 0.0
    %519 = vmatpush1.msra.mxu0 0.0
    %520 = vmatprep.subr.mxu0 0.0
    %521 = vmatpush1.msra.mxu0 0.0
    %522 = vmatprep.subr.mxu0 0.0
    %523 = vmatpush1.msra.mxu0 0.0
    %524 = vmatprep.subr.mxu0 0.0
    %525 = vmatpush1.msra.mxu0 0.0
    %526 = vmatprep.subr.mxu0 0.0
    %527 = vmatpush1.msra.mxu0 0.0
    %528 = vmatprep.subr.mxu0 0.0
    %529 = vmatpush1.msra.mxu0 0.0
    %530 = vmatprep.subr.mxu0 0.0
    %531 = vmatpush1.msra.mxu0 0.0
    %532 = vmatprep.subr.mxu0 0.0
    %533 = vmatpush1.msra.mxu0 0.0
    %534 = vmatprep.subr.mxu0 0.0
    %535 = vmatpush1.msra.mxu0 0.0
    %536 = vmatprep.subr.mxu0 0.0
    %537 = vmatpush1.msra.mxu0 0.0
    %538 = vmatprep.subr.mxu0 0.0
    %539 = vmatpush1.msra.mxu0 0.0
    %540 = vmatprep.subr.mxu0 0.0
    %541 = vmatpush1.msra.mxu0 0.0
    %542 = vmatprep.subr.mxu0 0.0
    %543 = vmatpush1.msra.mxu0 0.0
    %544 = vmatprep.subr.mxu0 0.0
    %545 = vmatpush1.msra.mxu0 0.0
    %546 = vmatprep.subr.mxu0 0.0
    %547 = vmatpush1.msra.mxu0 0.0
    %548 = vmatprep.subr.mxu0 0.0
    %549 = vmatpush1.msra.mxu0 0.0
    %550 = vmatprep.subr.mxu0 0.0
    %551 = vmatpush1.msra.mxu0 0.0
    %552 = vmatprep.mubr.f32.mxu0 0.0
    %553 = vmatmul.mubr.f32.gmra.mrb[0].mxu0 %v486
    %v554 = vpop.f32.mrb[0].mxu0
    %v555 = vadd.f32 %v482, %v554
    %v556 = vpop.f32.mrb[0].mxu0
    %557 = vdwg.mxu0
    %v558 = vld [vmem:[#allocation8 + $0x4] ss:$0 sm:$0xff]
    %v559 = vadd.f32 %v555, %v558
    %v560 = vmax.f32 %v559, 0.0
    %v561 = vld [vmem:[#allocation7 + $0x260] sm:$0xff]
    %v562 = vld [vmem:[#allocation7 + $0x270] sm:$0xff]
    %v563 = vld [vmem:[#allocation7 + $0x280] sm:$0xff]
    %v564 = vld [vmem:[#allocation7 + $0x290] sm:$0xff]
    %v565 = vld [vmem:[#allocation7 + $0x2a0] sm:$0xff]
    %v566 = vld [vmem:[#allocation7 + $0x2b0] sm:$0xff]
    %v567 = vld [vmem:[#allocation7 + $0x2c0] sm:$0xff]
    %v568 = vld [vmem:[#allocation7 + $0x2d0] sm:$0xff]
    %v569 = vld [vmem:[#allocation8 + $0x5] ss:$0 sm:$0xff]
    %v571 = vsel %vm160, %v560, 0
    %573 = vmatprep.subr.mxu0 0.0
    %574 = vmatpush1.msra.mxu0 %v561
    %575 = vmatprep.subr.mxu0 0.0
    %576 = vmatpush1.msra.mxu0 %v562
    %577 = vmatprep.subr.mxu0 0.0
    %578 = vmatpush1.msra.mxu0 %v563
    %579 = vmatprep.subr.mxu0 0.0
    %580 = vmatpush1.msra.mxu0 %v564
    %581 = vmatprep.subr.mxu0 0.0
    %582 = vmatpush1.msra.mxu0 %v565
    %583 = vmatprep.subr.mxu0 0.0
    %584 = vmatpush1.msra.mxu0 %v566
    %585 = vmatprep.subr.mxu0 0.0
    %586 = vmatpush1.msra.mxu0 %v567
    %587 = vmatprep.subr.mxu0 0.0
    %588 = vmatpush1.msra.mxu0 %v568
    %589 = vmatprep.subr.mxu0 0.0
    %590 = vmatpush1.msra.mxu0 0.0
    %591 = vmatprep.subr.mxu0 0.0
    %592 = vmatpush1.msra.mxu0 0.0
    %593 = vmatprep.subr.mxu0 0.0
    %594 = vmatpush1.msra.mxu0 0.0
    %595 = vmatprep.subr.mxu0 0.0
    %596 = vmatpush1.msra.mxu0 0.0
    %597 = vmatprep.subr.mxu0 0.0
    %598 = vmatpush1.msra.mxu0 0.0
    %599 = vmatprep.subr.mxu0 0.0
    %600 = vmatpush1.msra.mxu0 0.0
    %601 = vmatprep.subr.mxu0 0.0
    %602 = vmatpush1.msra.mxu0 0.0
    %603 = vmatprep.subr.mxu0 0.0
    %604 = vmatpush1.msra.mxu0 0.0
    %605 = vmatprep.subr.mxu0 0.0
    %606 = vmatpush1.msra.mxu0 0.0
    %607 = vmatprep.subr.mxu0 0.0
    %608 = vmatpush1.msra.mxu0 0.0
    %609 = vmatprep.subr.mxu0 0.0
    %610 = vmatpush1.msra.mxu0 0.0
    %611 = vmatprep.subr.mxu0 0.0
    %612 = vmatpush1.msra.mxu0 0.0
    %613 = vmatprep.subr.mxu0 0.0
    %614 = vmatpush1.msra.mxu0 0.0
    %615 = vmatprep.subr.mxu0 0.0
    %616 = vmatpush1.msra.mxu0 0.0
    %617 = vmatprep.subr.mxu0 0.0
    %618 = vmatpush1.msra.mxu0 0.0
    %619 = vmatprep.subr.mxu0 0.0
    %620 = vmatpush1.msra.mxu0 0.0
    %621 = vmatprep.subr.mxu0 0.0
    %622 = vmatpush1.msra.mxu0 0.0
    %623 = vmatprep.subr.mxu0 0.0
    %624 = vmatpush1.msra.mxu0 0.0
    %625 = vmatprep.subr.mxu0 0.0
    %626 = vmatpush1.msra.mxu0 0.0
    %627 = vmatprep.subr.mxu0 0.0
    %628 = vmatpush1.msra.mxu0 0.0
    %629 = vmatprep.subr.mxu0 0.0
    %630 = vmatpush1.msra.mxu0 0.0
    %631 = vmatprep.subr.mxu0 0.0
    %632 = vmatpush1.msra.mxu0 0.0
    %633 = vmatprep.subr.mxu0 0.0
    %634 = vmatpush1.msra.mxu0 0.0
    %635 = vmatprep.subr.mxu0 0.0
    %636 = vmatpush1.msra.mxu0 0.0
    %637 = vmatprep.mubr.f32.mxu0 0.0
    %638 = vmatmul.mubr.f32.gmra.mrb[0].mxu0 %v571
    %v639 = vpop.f32.mrb[0].mxu0
    %v640 = vadd.f32 %v569, %v639
    %v641 = vpop.f32.mrb[0].mxu0
    %642 = vdwg.mxu0
    %v643 = vxor.u32 %v640, 2147483648
    %v644 = vmul.f32 %v643, 1.442695
    %v645 = vpow.pop %v644
    %v646 = vadd.f32 %v645, 1.0
    %v647 = vrcp.pop %v646
    %v648 = vmul.f32 1.0, %v647
    %v649 = vld [vmem:[#allocation7 + $0x2e0] sm:$0xff]
    %v650 = vld [vmem:[#allocation7 + $0x2e8] sm:$0xff]
    %v651 = vld [vmem:[#allocation7 + $0x2f0] sm:$0xff]
    %v652 = vld [vmem:[#allocation7 + $0x2f8] sm:$0xff]
    %v653 = vld [vmem:[#allocation7 + $0x300] sm:$0xff]
    %v654 = vld [vmem:[#allocation7 + $0x308] sm:$0xff]
    %v655 = vld [vmem:[#allocation7 + $0x310] sm:$0xff]
    %v656 = vld [vmem:[#allocation7 + $0x318] sm:$0xff]
    %s657 = scalar_lea.vmem [#allocation8], 6
    %v658 = vld [vmem:[%s657] ss:$8 sm:$0x3]
    %v660 = vlaneseq
    %v661 = vshrl.u32 %v660, 7
    %v662 = vsub.s32 0, %v661
    %v663 = vrot.slane %v658, %v662
    %v664 = vlaneseq
    %v665 = vshrl.u32 %v664, 7
    %v666 = vsub.s32 1, %v665
    %v667 = vrot.slane %v658, %v666
    %670 = vmatprep.subr.mxu0 %v650
    %671 = vmatpush1.msra.mxu0 %v649
    %672 = vmatprep.subr.mxu0 %v652
    %673 = vmatpush1.msra.mxu0 %v651
    %674 = vmatprep.subr.mxu0 %v654
    %675 = vmatpush1.msra.mxu0 %v653
    %676 = vmatprep.subr.mxu0 %v656
    %677 = vmatpush1.msra.mxu0 %v655
    %678 = vmatprep.subr.mxu0 0.0
    %679 = vmatpush1.msra.mxu0 0.0
    %680 = vmatprep.subr.mxu0 0.0
    %681 = vmatpush1.msra.mxu0 0.0
    %682 = vmatprep.subr.mxu0 0.0
    %683 = vmatpush1.msra.mxu0 0.0
    %684 = vmatprep.subr.mxu0 0.0
    %685 = vmatpush1.msra.mxu0 0.0
    %686 = vmatprep.subr.mxu0 0.0
    %687 = vmatpush1.msra.mxu0 0.0
    %688 = vmatprep.subr.mxu0 0.0
    %689 = vmatpush1.msra.mxu0 0.0
    %690 = vmatprep.subr.mxu0 0.0
    %691 = vmatpush1.msra.mxu0 0.0
    %692 = vmatprep.subr.mxu0 0.0
    %693 = vmatpush1.msra.mxu0 0.0
    %694 = vmatprep.subr.mxu0 0.0
    %695 = vmatpush1.msra.mxu0 0.0
    %696 = vmatprep.subr.mxu0 0.0
    %697 = vmatpush1.msra.mxu0 0.0
    %698 = vmatprep.subr.mxu0 0.0
    %699 = vmatpush1.msra.mxu0 0.0
    %700 = vmatprep.subr.mxu0 0.0
    %701 = vmatpush1.msra.mxu0 0.0
    %702 = vmatprep.subr.mxu0 0.0
    %703 = vmatpush1.msra.mxu0 0.0
    %704 = vmatprep.subr.mxu0 0.0
    %705 = vmatpush1.msra.mxu0 0.0
    %706 = vmatprep.subr.mxu0 0.0
    %707 = vmatpush1.msra.mxu0 0.0
    %708 = vmatprep.subr.mxu0 0.0
    %709 = vmatpush1.msra.mxu0 0.0
    %710 = vmatprep.subr.mxu0 0.0
    %711 = vmatpush1.msra.mxu0 0.0
    %712 = vmatprep.subr.mxu0 0.0
    %713 = vmatpush1.msra.mxu0 0.0
    %714 = vmatprep.subr.mxu0 0.0
    %715 = vmatpush1.msra.mxu0 0.0
    %716 = vmatprep.subr.mxu0 0.0
    %717 = vmatpush1.msra.mxu0 0.0
    %718 = vmatprep.subr.mxu0 0.0
    %719 = vmatpush1.msra.mxu0 0.0
    %720 = vmatprep.subr.mxu0 0.0
    %721 = vmatpush1.msra.mxu0 0.0
    %722 = vmatprep.subr.mxu0 0.0
    %723 = vmatpush1.msra.mxu0 0.0
    %724 = vmatprep.subr.mxu0 0.0
    %725 = vmatpush1.msra.mxu0 0.0
    %726 = vmatprep.subr.mxu0 0.0
    %727 = vmatpush1.msra.mxu0 0.0
    %728 = vmatprep.subr.mxu0 0.0
    %729 = vmatpush1.msra.mxu0 0.0
    %730 = vmatprep.subr.mxu0 0.0
    %731 = vmatpush1.msra.mxu0 0.0
    %732 = vmatprep.subr.mxu0 0.0
    %733 = vmatpush1.msra.mxu0 0.0
    %734 = vmatprep.mubr.f32.mxu0 0.0
    %735 = vmatmul.mubr.f32.gmra.mrb[0].mxu0 %v78
    %v736 = vpop.f32.mrb[0].mxu0
    %v737 = vadd.f32 %v663, %v736
    %v738 = vpop.f32.mrb[0].mxu0
    %v739 = vadd.f32 %v667, %v738
    %740 = vdwg.mxu0
    %v741 = vtanh.pop %v737
    %v742 = vtanh.pop %v739
    %v743 = vld [vmem:[#allocation7 + $0x320] sm:$0xff]
    %v744 = vld [vmem:[#allocation7 + $0x328] sm:$0xff]
    %v745 = vld [vmem:[#allocation7 + $0x330] sm:$0xff]
    %v746 = vld [vmem:[#allocation7 + $0x338] sm:$0xff]
    %v747 = vld [vmem:[#allocation7 + $0x340] sm:$0xff]
    %v748 = vld [vmem:[#allocation7 + $0x348] sm:$0xff]
    %v749 = vld [vmem:[#allocation7 + $0x350] sm:$0xff]
    %v750 = vld [vmem:[#allocation7 + $0x358] sm:$0xff]
    %v751 = vld [vmem:[#allocation7 + $0x360] sm:$0xff]
    %v752 = vld [vmem:[#allocation7 + $0x368] sm:$0xff]
    %v753 = vld [vmem:[#allocation7 + $0x370] sm:$0xff]
    %v754 = vld [vmem:[#allocation7 + $0x378] sm:$0xff]
    %v755 = vld [vmem:[#allocation7 + $0x380] sm:$0xff]
    %v756 = vld [vmem:[#allocation7 + $0x388] sm:$0xff]
    %v757 = vld [vmem:[#allocation7 + $0x390] sm:$0xff]
    %v758 = vld [vmem:[#allocation7 + $0x398] sm:$0xff]
    %v759 = vld [vmem:[#allocation7 + $0x3a0] sm:$0xff]
    %v760 = vld [vmem:[#allocation7 + $0x3a8] sm:$0xff]
    %v761 = vld [vmem:[#allocation7 + $0x3b0] sm:$0xff]
    %v762 = vld [vmem:[#allocation7 + $0x3b8] sm:$0xff]
    %v763 = vld [vmem:[#allocation7 + $0x3c0] sm:$0xff]
    %v764 = vld [vmem:[#allocation7 + $0x3c8] sm:$0xff]
    %v765 = vld [vmem:[#allocation7 + $0x3d0] sm:$0xff]
    %v766 = vld [vmem:[#allocation7 + $0x3d8] sm:$0xff]
    %v767 = vld [vmem:[#allocation7 + $0x3e0] sm:$0xff]
    %v768 = vld [vmem:[#allocation7 + $0x3e8] sm:$0xff]
    %v769 = vld [vmem:[#allocation7 + $0x3f0] sm:$0xff]
    %v770 = vld [vmem:[#allocation7 + $0x3f8] sm:$0xff]
    %v771 = vld [vmem:[#allocation7 + $0x400] sm:$0xff]
    %v772 = vld [vmem:[#allocation7 + $0x408] sm:$0xff]
    %v773 = vld [vmem:[#allocation7 + $0x410] sm:$0xff]
    %v774 = vld [vmem:[#allocation7 + $0x418] sm:$0xff]
    %v775 = vld [vmem:[#allocation7 + $0x420] sm:$0xff]
    %v776 = vld [vmem:[#allocation7 + $0x428] sm:$0xff]
    %v777 = vld [vmem:[#allocation7 + $0x430] sm:$0xff]
    %v778 = vld [vmem:[#allocation7 + $0x438] sm:$0xff]
    %v779 = vld [vmem:[#allocation7 + $0x440] sm:$0xff]
    %v780 = vld [vmem:[#allocation7 + $0x448] sm:$0xff]
    %v781 = vld [vmem:[#allocation7 + $0x450] sm:$0xff]
    %v782 = vld [vmem:[#allocation7 + $0x458] sm:$0xff]
    %v783 = vld [vmem:[#allocation7 + $0x460] sm:$0xff]
    %v784 = vld [vmem:[#allocation7 + $0x468] sm:$0xff]
    %v785 = vld [vmem:[#allocation7 + $0x470] sm:$0xff]
    %v786 = vld [vmem:[#allocation7 + $0x478] sm:$0xff]
    %v787 = vld [vmem:[#allocation7 + $0x480] sm:$0xff]
    %v788 = vld [vmem:[#allocation7 + $0x488] sm:$0xff]
    %v789 = vld [vmem:[#allocation7 + $0x490] sm:$0xff]
    %v790 = vld [vmem:[#allocation7 + $0x498] sm:$0xff]
    %v791 = vld [vmem:[#allocation7 + $0x4a0] sm:$0xff]
    %v792 = vld [vmem:[#allocation7 + $0x4a8] sm:$0xff]
    %v793 = vld [vmem:[#allocation7 + $0x4b0] sm:$0xff]
    %v794 = vld [vmem:[#allocation7 + $0x4b8] sm:$0xff]
    %v795 = vld [vmem:[#allocation7 + $0x4c0] sm:$0xff]
    %v796 = vld [vmem:[#allocation7 + $0x4c8] sm:$0xff]
    %v797 = vld [vmem:[#allocation7 + $0x4d0] sm:$0xff]
    %v798 = vld [vmem:[#allocation7 + $0x4d8] sm:$0xff]
    %v799 = vld [vmem:[#allocation7 + $0x4e0] sm:$0xff]
    %v800 = vld [vmem:[#allocation7 + $0x4e8] sm:$0xff]
    %v801 = vld [vmem:[#allocation7 + $0x4f0] sm:$0xff]
    %v802 = vld [vmem:[#allocation7 + $0x4f8] sm:$0xff]
    %v803 = vld [vmem:[#allocation7 + $0x500] sm:$0xff]
    %v804 = vld [vmem:[#allocation7 + $0x508] sm:$0xff]
    %v805 = vld [vmem:[#allocation7 + $0x510] sm:$0xff]
    %v806 = vld [vmem:[#allocation7 + $0x518] sm:$0xff]
    %s807 = scalar_lea.vmem [#allocation8], 7
    %v808 = vld [vmem:[%s807] ss:$8 sm:$0x3]
    %v810 = vlaneseq
    %v811 = vshrl.u32 %v810, 7
    %v812 = vsub.s32 0, %v811
    %v813 = vrot.slane %v808, %v812
    %v814 = vlaneseq
    %v815 = vshrl.u32 %v814, 7
    %v816 = vsub.s32 1, %v815
    %v817 = vrot.slane %v808, %v816
    %820 = vmatprep.subr.mxu0 %v744
    %821 = vmatpush1.msra.mxu0 %v743
    %822 = vmatprep.subr.mxu0 %v746
    %823 = vmatpush1.msra.mxu0 %v745
    %824 = vmatprep.subr.mxu0 %v748
    %825 = vmatpush1.msra.mxu0 %v747
    %826 = vmatprep.subr.mxu0 %v750
    %827 = vmatpush1.msra.mxu0 %v749
    %828 = vmatprep.subr.mxu0 %v752
    %829 = vmatpush1.msra.mxu0 %v751
    %830 = vmatprep.subr.mxu0 %v754
    %831 = vmatpush1.msra.mxu0 %v753
    %832 = vmatprep.subr.mxu0 %v756
    %833 = vmatpush1.msra.mxu0 %v755
    %834 = vmatprep.subr.mxu0 %v758
    %835 = vmatpush1.msra.mxu0 %v757
    %836 = vmatprep.subr.mxu0 %v760
    %837 = vmatpush1.msra.mxu0 %v759
    %838 = vmatprep.subr.mxu0 %v762
    %839 = vmatpush1.msra.mxu0 %v761
    %840 = vmatprep.subr.mxu0 %v764
    %841 = vmatpush1.msra.mxu0 %v763
    %842 = vmatprep.subr.mxu0 %v766
    %843 = vmatpush1.msra.mxu0 %v765
    %844 = vmatprep.subr.mxu0 %v768
    %845 = vmatpush1.msra.mxu0 %v767
    %846 = vmatprep.subr.mxu0 %v770
    %847 = vmatpush1.msra.mxu0 %v769
    %848 = vmatprep.subr.mxu0 %v772
    %849 = vmatpush1.msra.mxu0 %v771
    %850 = vmatprep.subr.mxu0 %v774
    %851 = vmatpush1.msra.mxu0 %v773
    %852 = vmatprep.subr.mxu0 %v776
    %853 = vmatpush1.msra.mxu0 %v775
    %854 = vmatprep.subr.mxu0 %v778
    %855 = vmatpush1.msra.mxu0 %v777
    %856 = vmatprep.subr.mxu0 %v780
    %857 = vmatpush1.msra.mxu0 %v779
    %858 = vmatprep.subr.mxu0 %v782
    %859 = vmatpush1.msra.mxu0 %v781
    %860 = vmatprep.subr.mxu0 %v784
    %861 = vmatpush1.msra.mxu0 %v783
    %862 = vmatprep.subr.mxu0 %v786
    %863 = vmatpush1.msra.mxu0 %v785
    %864 = vmatprep.subr.mxu0 %v788
    %865 = vmatpush1.msra.mxu0 %v787
    %866 = vmatprep.subr.mxu0 %v790
    %867 = vmatpush1.msra.mxu0 %v789
    %868 = vmatprep.subr.mxu0 %v792
    %869 = vmatpush1.msra.mxu0 %v791
    %870 = vmatprep.subr.mxu0 %v794
    %871 = vmatpush1.msra.mxu0 %v793
    %872 = vmatprep.subr.mxu0 %v796
    %873 = vmatpush1.msra.mxu0 %v795
    %874 = vmatprep.subr.mxu0 %v798
    %875 = vmatpush1.msra.mxu0 %v797
    %876 = vmatprep.subr.mxu0 %v800
    %877 = vmatpush1.msra.mxu0 %v799
    %878 = vmatprep.subr.mxu0 %v802
    %879 = vmatpush1.msra.mxu0 %v801
    %880 = vmatprep.subr.mxu0 %v804
    %881 = vmatpush1.msra.mxu0 %v803
    %882 = vmatprep.subr.mxu0 %v806
    %883 = vmatpush1.msra.mxu0 %v805
    %884 = vmatprep.mubr.f32.mxu0 %v742
    %885 = vmatmul.mubr.f32.gmra.mrb[0].mxu0 %v741
    %v886 = vpop.f32.mrb[0].mxu0
    %v887 = vadd.f32 %v813, %v886
    %v888 = vpop.f32.mrb[0].mxu0
    %v889 = vadd.f32 %v817, %v888
    %890 = vdwg.mxu0
    %v891 = vtanh.pop %v887
    %v892 = vtanh.pop %v889
    %v893 = vld [vmem:[#allocation7 + $0x520] sm:$0xff]
    %v894 = vld [vmem:[#allocation7 + $0x530] sm:$0xff]
    %v895 = vld [vmem:[#allocation7 + $0x540] sm:$0xff]
    %v896 = vld [vmem:[#allocation7 + $0x550] sm:$0xff]
    %v897 = vld [vmem:[#allocation7 + $0x560] sm:$0xff]
    %v898 = vld [vmem:[#allocation7 + $0x570] sm:$0xff]
    %v899 = vld [vmem:[#allocation7 + $0x580] sm:$0xff]
    %v900 = vld [vmem:[#allocation7 + $0x590] sm:$0xff]
    %v901 = vld [vmem:[#allocation7 + $0x5a0] sm:$0xff]
    %v902 = vld [vmem:[#allocation7 + $0x5b0] sm:$0xff]
    %v903 = vld [vmem:[#allocation7 + $0x5c0] sm:$0xff]
    %v904 = vld [vmem:[#allocation7 + $0x5d0] sm:$0xff]
    %v905 = vld [vmem:[#allocation7 + $0x5e0] sm:$0xff]
    %v906 = vld [vmem:[#allocation7 + $0x5f0] sm:$0xff]
    %v907 = vld [vmem:[#allocation7 + $0x600] sm:$0xff]
    %v908 = vld [vmem:[#allocation7 + $0x610] sm:$0xff]
    %v909 = vld [vmem:[#allocation7 + $0x620] sm:$0xff]
    %v910 = vld [vmem:[#allocation7 + $0x630] sm:$0xff]
    %v911 = vld [vmem:[#allocation7 + $0x640] sm:$0xff]
    %v912 = vld [vmem:[#allocation7 + $0x650] sm:$0xff]
    %v913 = vld [vmem:[#allocation7 + $0x660] sm:$0xff]
    %v914 = vld [vmem:[#allocation7 + $0x670] sm:$0xff]
    %v915 = vld [vmem:[#allocation7 + $0x680] sm:$0xff]
    %v916 = vld [vmem:[#allocation7 + $0x690] sm:$0xff]
    %v917 = vld [vmem:[#allocation7 + $0x6a0] sm:$0xff]
    %v918 = vld [vmem:[#allocation7 + $0x6b0] sm:$0xff]
    %v919 = vld [vmem:[#allocation7 + $0x6c0] sm:$0xff]
    %v920 = vld [vmem:[#allocation7 + $0x6d0] sm:$0xff]
    %v921 = vld [vmem:[#allocation7 + $0x6e0] sm:$0xff]
    %v922 = vld [vmem:[#allocation7 + $0x6f0] sm:$0xff]
    %v923 = vld [vmem:[#allocation7 + $0x700] sm:$0xff]
    %v924 = vld [vmem:[#allocation7 + $0x710] sm:$0xff]
    %v925 = vld [vmem:[#allocation8 + $0x10] ss:$0 sm:$0xff]
    %926 = vmatprep.subr.mxu0 0.0
    %927 = vmatpush1.msra.mxu0 %v893
    %928 = vmatprep.subr.mxu0 0.0
    %929 = vmatpush1.msra.mxu0 %v894
    %930 = vmatprep.subr.mxu0 0.0
    %931 = vmatpush1.msra.mxu0 %v895
    %932 = vmatprep.subr.mxu0 0.0
    %933 = vmatpush1.msra.mxu0 %v896
    %934 = vmatprep.subr.mxu0 0.0
    %935 = vmatpush1.msra.mxu0 %v897
    %936 = vmatprep.subr.mxu0 0.0
    %937 = vmatpush1.msra.mxu0 %v898
    %938 = vmatprep.subr.mxu0 0.0
    %939 = vmatpush1.msra.mxu0 %v899
    %940 = vmatprep.subr.mxu0 0.0
    %941 = vmatpush1.msra.mxu0 %v900
    %942 = vmatprep.subr.mxu0 0.0
    %943 = vmatpush1.msra.mxu0 %v901
    %944 = vmatprep.subr.mxu0 0.0
    %945 = vmatpush1.msra.mxu0 %v902
    %946 = vmatprep.subr.mxu0 0.0
    %947 = vmatpush1.msra.mxu0 %v903
    %948 = vmatprep.subr.mxu0 0.0
    %949 = vmatpush1.msra.mxu0 %v904
    %950 = vmatprep.subr.mxu0 0.0
    %951 = vmatpush1.msra.mxu0 %v905
    %952 = vmatprep.subr.mxu0 0.0
    %953 = vmatpush1.msra.mxu0 %v906
    %954 = vmatprep.subr.mxu0 0.0
    %955 = vmatpush1.msra.mxu0 %v907
    %956 = vmatprep.subr.mxu0 0.0
    %957 = vmatpush1.msra.mxu0 %v908
    %958 = vmatprep.subr.mxu0 0.0
    %959 = vmatpush1.msra.mxu0 %v909
    %960 = vmatprep.subr.mxu0 0.0
    %961 = vmatpush1.msra.mxu0 %v910
    %962 = vmatprep.subr.mxu0 0.0
    %963 = vmatpush1.msra.mxu0 %v911
    %964 = vmatprep.subr.mxu0 0.0
    %965 = vmatpush1.msra.mxu0 %v912
    %966 = vmatprep.subr.mxu0 0.0
    %967 = vmatpush1.msra.mxu0 %v913
    %968 = vmatprep.subr.mxu0 0.0
    %969 = vmatpush1.msra.mxu0 %v914
    %970 = vmatprep.subr.mxu0 0.0
    %971 = vmatpush1.msra.mxu0 %v915
    %972 = vmatprep.subr.mxu0 0.0
    %973 = vmatpush1.msra.mxu0 %v916
    %974 = vmatprep.subr.mxu0 0.0
    %975 = vmatpush1.msra.mxu0 %v917
    %976 = vmatprep.subr.mxu0 0.0
    %977 = vmatpush1.msra.mxu0 %v918
    %978 = vmatprep.subr.mxu0 0.0
    %979 = vmatpush1.msra.mxu0 %v919
    %980 = vmatprep.subr.mxu0 0.0
    %981 = vmatpush1.msra.mxu0 %v920
    %982 = vmatprep.subr.mxu0 0.0
    %983 = vmatpush1.msra.mxu0 %v921
    %984 = vmatprep.subr.mxu0 0.0
    %985 = vmatpush1.msra.mxu0 %v922
    %986 = vmatprep.subr.mxu0 0.0
    %987 = vmatpush1.msra.mxu0 %v923
    %988 = vmatprep.subr.mxu0 0.0
    %989 = vmatpush1.msra.mxu0 %v924
    %990 = vmatprep.mubr.f32.mxu0 %v892
    %991 = vmatmul.mubr.f32.gmra.mrb[0].mxu0 %v891
    %v992 = vpop.f32.mrb[0].mxu0
    %v993 = vadd.f32 %v925, %v992
    %v994 = vpop.f32.mrb[0].mxu0
    %995 = vdwg.mxu0
    %v996 = vld [vmem:[#allocation7 + $0x720] sm:$0xf]
    %vm997 = vcmask 31744
    %v999 = vsel %vm997, %v648, 0
    %vm1001 = vcmask 1043456
    %v1003 = vsel %vm1001, %v996, 0
    %1005 = vmatprep.subr.mxu0 0.0
    %1006 = vmatpush1.msra.mxu0 %v1003
    %1007 = vmatprep.subr.mxu0 0.0
    %1008 = vmatpush1.msra.mxu0 0.0
    %1009 = vmatprep.subr.mxu0 0.0
    %1010 = vmatpush1.msra.mxu0 0.0
    %1011 = vmatprep.subr.mxu0 0.0
    %1012 = vmatpush1.msra.mxu0 0.0
    %1013 = vmatprep.subr.mxu0 0.0
    %1014 = vmatpush1.msra.mxu0 0.0
    %1015 = vmatprep.subr.mxu0 0.0
    %1016 = vmatpush1.msra.mxu0 0.0
    %1017 = vmatprep.subr.mxu0 0.0
    %1018 = vmatpush1.msra.mxu0 0.0
    %1019 = vmatprep.subr.mxu0 0.0
    %1020 = vmatpush1.msra.mxu0 0.0
    %1021 = vmatprep.subr.mxu0 0.0
    %1022 = vmatpush1.msra.mxu0 0.0
    %1023 = vmatprep.subr.mxu0 0.0
    %1024 = vmatpush1.msra.mxu0 0.0
    %1025 = vmatprep.subr.mxu0 0.0
    %1026 = vmatpush1.msra.mxu0 0.0
    %1027 = vmatprep.subr.mxu0 0.0
    %1028 = vmatpush1.msra.mxu0 0.0
    %1029 = vmatprep.subr.mxu0 0.0
    %1030 = vmatpush1.msra.mxu0 0.0
    %1031 = vmatprep.subr.mxu0 0.0
    %1032 = vmatpush1.msra.mxu0 0.0
    %1033 = vmatprep.subr.mxu0 0.0
    %1034 = vmatpush1.msra.mxu0 0.0
    %1035 = vmatprep.subr.mxu0 0.0
    %1036 = vmatpush1.msra.mxu0 0.0
    %1037 = vmatprep.subr.mxu0 0.0
    %1038 = vmatpush1.msra.mxu0 0.0
    %1039 = vmatprep.subr.mxu0 0.0
    %1040 = vmatpush1.msra.mxu0 0.0
    %1041 = vmatprep.subr.mxu0 0.0
    %1042 = vmatpush1.msra.mxu0 0.0
    %1043 = vmatprep.subr.mxu0 0.0
    %1044 = vmatpush1.msra.mxu0 0.0
    %1045 = vmatprep.subr.mxu0 0.0
    %1046 = vmatpush1.msra.mxu0 0.0
    %1047 = vmatprep.subr.mxu0 0.0
    %1048 = vmatpush1.msra.mxu0 0.0
    %1049 = vmatprep.subr.mxu0 0.0
    %1050 = vmatpush1.msra.mxu0 0.0
    %1051 = vmatprep.subr.mxu0 0.0
    %1052 = vmatpush1.msra.mxu0 0.0
    %1053 = vmatprep.subr.mxu0 0.0
    %1054 = vmatpush1.msra.mxu0 0.0
    %1055 = vmatprep.subr.mxu0 0.0
    %1056 = vmatpush1.msra.mxu0 0.0
    %1057 = vmatprep.subr.mxu0 0.0
    %1058 = vmatpush1.msra.mxu0 0.0
    %1059 = vmatprep.subr.mxu0 0.0
    %1060 = vmatpush1.msra.mxu0 0.0
    %1061 = vmatprep.subr.mxu0 0.0
    %1062 = vmatpush1.msra.mxu0 0.0
    %1063 = vmatprep.subr.mxu0 0.0
    %1064 = vmatpush1.msra.mxu0 0.0
    %1065 = vmatprep.subr.mxu0 0.0
    %1066 = vmatpush1.msra.mxu0 0.0
    %1067 = vmatprep.subr.mxu0 0.0
    %1068 = vmatpush1.msra.mxu0 0.0
    %1069 = vmatprep.mubr.f32.mxu0 0.0
    %1070 = vmatmul.mubr.f32.gmra.mrb[0].mxu0 %v999
    %v1071 = vpop.f32.mrb[0].mxu0
    %v1072 = vadd.f32 0.0, %v1071
    %v1073 = vpop.f32.mrb[0].mxu0
    %1074 = vdwg.mxu0
    %v1075 = vld [vmem:[#allocation7 + $0x730] sm:$0xff]
    %v1076 = vld [vmem:[#allocation7 + $0x740] sm:$0xff]
    %v1077 = vld [vmem:[#allocation7 + $0x750] sm:$0xff]
    %v1078 = vld [vmem:[#allocation7 + $0x760] sm:$0xff]
    %v1080 = vsel %vm76, %v1072, 0
    %1082 = vmatprep.subr.mxu0 0.0
    %1083 = vmatpush1.msra.mxu0 %v1075
    %1084 = vmatprep.subr.mxu0 0.0
    %1085 = vmatpush1.msra.mxu0 %v1076
    %1086 = vmatprep.subr.mxu0 0.0
    %1087 = vmatpush1.msra.mxu0 %v1077
    %1088 = vmatprep.subr.mxu0 0.0
    %1089 = vmatpush1.msra.mxu0 %v1078
    %1090 = vmatprep.subr.mxu0 0.0
    %1091 = vmatpush1.msra.mxu0 0.0
    %1092 = vmatprep.subr.mxu0 0.0
    %1093 = vmatpush1.msra.mxu0 0.0
    %1094 = vmatprep.subr.mxu0 0.0
    %1095 = vmatpush1.msra.mxu0 0.0
    %1096 = vmatprep.subr.mxu0 0.0
    %1097 = vmatpush1.msra.mxu0 0.0
    %1098 = vmatprep.subr.mxu0 0.0
    %1099 = vmatpush1.msra.mxu0 0.0
    %1100 = vmatprep.subr.mxu0 0.0
    %1101 = vmatpush1.msra.mxu0 0.0
    %1102 = vmatprep.subr.mxu0 0.0
    %1103 = vmatpush1.msra.mxu0 0.0
    %1104 = vmatprep.subr.mxu0 0.0
    %1105 = vmatpush1.msra.mxu0 0.0
    %1106 = vmatprep.subr.mxu0 0.0
    %1107 = vmatpush1.msra.mxu0 0.0
    %1108 = vmatprep.subr.mxu0 0.0
    %1109 = vmatpush1.msra.mxu0 0.0
    %1110 = vmatprep.subr.mxu0 0.0
    %1111 = vmatpush1.msra.mxu0 0.0
    %1112 = vmatprep.subr.mxu0 0.0
    %1113 = vmatpush1.msra.mxu0 0.0
    %1114 = vmatprep.subr.mxu0 0.0
    %1115 = vmatpush1.msra.mxu0 0.0
    %1116 = vmatprep.subr.mxu0 0.0
    %1117 = vmatpush1.msra.mxu0 0.0
    %1118 = vmatprep.subr.mxu0 0.0
    %1119 = vmatpush1.msra.mxu0 0.0
    %1120 = vmatprep.subr.mxu0 0.0
    %1121 = vmatpush1.msra.mxu0 0.0
    %1122 = vmatprep.subr.mxu0 0.0
    %1123 = vmatpush1.msra.mxu0 0.0
    %1124 = vmatprep.subr.mxu0 0.0
    %1125 = vmatpush1.msra.mxu0 0.0
    %1126 = vmatprep.subr.mxu0 0.0
    %1127 = vmatpush1.msra.mxu0 0.0
    %1128 = vmatprep.subr.mxu0 0.0
    %1129 = vmatpush1.msra.mxu0 0.0
    %1130 = vmatprep.subr.mxu0 0.0
    %1131 = vmatpush1.msra.mxu0 0.0
    %1132 = vmatprep.subr.mxu0 0.0
    %1133 = vmatpush1.msra.mxu0 0.0
    %1134 = vmatprep.subr.mxu0 0.0
    %1135 = vmatpush1.msra.mxu0 0.0
    %1136 = vmatprep.subr.mxu0 0.0
    %1137 = vmatpush1.msra.mxu0 0.0
    %1138 = vmatprep.subr.mxu0 0.0
    %1139 = vmatpush1.msra.mxu0 0.0
    %1140 = vmatprep.subr.mxu0 0.0
    %1141 = vmatpush1.msra.mxu0 0.0
    %1142 = vmatprep.subr.mxu0 0.0
    %1143 = vmatpush1.msra.mxu0 0.0
    %1144 = vmatprep.subr.mxu0 0.0
    %1145 = vmatpush1.msra.mxu0 0.0
    %1146 = vmatprep.mubr.f32.mxu0 0.0
    %1147 = vmatmul.mubr.f32.gmra.mrb[0].mxu0 %v1080
    %v1148 = vpop.f32.mrb[0].mxu0
    %v1149 = vadd.f32 0.0, %v1148
    %v1150 = vpop.f32.mrb[0].mxu0
    %1151 = vdwg.mxu0
    %v1152 = vmul.f32 %v1072, %v993
    %v1154 = vsel %vm76, %v1152, 0
    %1156 = vmatprep.subr.mxu0 0.0
    %1157 = vmatpush1.msra.mxu0 %v1075
    %1158 = vmatprep.subr.mxu0 0.0
    %1159 = vmatpush1.msra.mxu0 %v1076
    %1160 = vmatprep.subr.mxu0 0.0
    %1161 = vmatpush1.msra.mxu0 %v1077
    %1162 = vmatprep.subr.mxu0 0.0
    %1163 = vmatpush1.msra.mxu0 %v1078
    %1164 = vmatprep.subr.mxu0 0.0
    %1165 = vmatpush1.msra.mxu0 0.0
    %1166 = vmatprep.subr.mxu0 0.0
    %1167 = vmatpush1.msra.mxu0 0.0
    %1168 = vmatprep.subr.mxu0 0.0
    %1169 = vmatpush1.msra.mxu0 0.0
    %1170 = vmatprep.subr.mxu0 0.0
    %1171 = vmatpush1.msra.mxu0 0.0
    %1172 = vmatprep.subr.mxu0 0.0
    %1173 = vmatpush1.msra.mxu0 0.0
    %1174 = vmatprep.subr.mxu0 0.0
    %1175 = vmatpush1.msra.mxu0 0.0
    %1176 = vmatprep.subr.mxu0 0.0
    %1177 = vmatpush1.msra.mxu0 0.0
    %1178 = vmatprep.subr.mxu0 0.0
    %1179 = vmatpush1.msra.mxu0 0.0
    %1180 = vmatprep.subr.mxu0 0.0
    %1181 = vmatpush1.msra.mxu0 0.0
    %1182 = vmatprep.subr.mxu0 0.0
    %1183 = vmatpush1.msra.mxu0 0.0
    %1184 = vmatprep.subr.mxu0 0.0
    %1185 = vmatpush1.msra.mxu0 0.0
    %1186 = vmatprep.subr.mxu0 0.0
    %1187 = vmatpush1.msra.mxu0 0.0
    %1188 = vmatprep.subr.mxu0 0.0
    %1189 = vmatpush1.msra.mxu0 0.0
    %1190 = vmatprep.subr.mxu0 0.0
    %1191 = vmatpush1.msra.mxu0 0.0
    %1192 = vmatprep.subr.mxu0 0.0
    %1193 = vmatpush1.msra.mxu0 0.0
    %1194 = vmatprep.subr.mxu0 0.0
    %1195 = vmatpush1.msra.mxu0 0.0
    %1196 = vmatprep.subr.mxu0 0.0
    %1197 = vmatpush1.msra.mxu0 0.0
    %1198 = vmatprep.subr.mxu0 0.0
    %1199 = vmatpush1.msra.mxu0 0.0
    %1200 = vmatprep.subr.mxu0 0.0
    %1201 = vmatpush1.msra.mxu0 0.0
    %1202 = vmatprep.subr.mxu0 0.0
    %1203 = vmatpush1.msra.mxu0 0.0
    %1204 = vmatprep.subr.mxu0 0.0
    %1205 = vmatpush1.msra.mxu0 0.0
    %1206 = vmatprep.subr.mxu0 0.0
    %1207 = vmatpush1.msra.mxu0 0.0
    %1208 = vmatprep.subr.mxu0 0.0
    %1209 = vmatpush1.msra.mxu0 0.0
    %1210 = vmatprep.subr.mxu0 0.0
    %1211 = vmatpush1.msra.mxu0 0.0
    %1212 = vmatprep.subr.mxu0 0.0
    %1213 = vmatpush1.msra.mxu0 0.0
    %1214 = vmatprep.subr.mxu0 0.0
    %1215 = vmatpush1.msra.mxu0 0.0
    %1216 = vmatprep.subr.mxu0 0.0
    %1217 = vmatpush1.msra.mxu0 0.0
    %1218 = vmatprep.subr.mxu0 0.0
    %1219 = vmatpush1.msra.mxu0 0.0
    %1220 = vmatprep.mubr.f32.mxu0 0.0
    %1221 = vmatmul.mubr.f32.gmra.mrb[0].mxu0 %v1154
    %v1222 = vpop.f32.mrb[0].mxu0
    %v1223 = vadd.f32 0.0, %v1222
    %v1224 = vpop.f32.mrb[0].mxu0
    %1225 = vdwg.mxu0
    %v1226 = vrcp.pop %v1149
    %v1227 = vmul.f32 %v1223, %v1226
    %v1228 = vld [vmem:[#allocation7 + $0x770] sm:$0xff]
    %v1229 = vld [vmem:[#allocation7 + $0x780] sm:$0xff]
    %v1230 = vld [vmem:[#allocation7 + $0x790] sm:$0xff]
    %v1231 = vld [vmem:[#allocation7 + $0x7a0] sm:$0xff]
    %v1232 = vld [vmem:[#allocation7 + $0x7b0] sm:$0xff]
    %v1233 = vld [vmem:[#allocation7 + $0x7c0] sm:$0xff]
    %1234 = vmatprep.subr.mxu0 0.0
    %1235 = vmatpush1.msra.mxu0 %v1232
    %1236 = vmatprep.subr.mxu0 0.0
    %1237 = vmatpush1.msra.mxu0 %v1233
    %1238 = vmatprep.subr.mxu0 0.0
    %1239 = vmatpush1.msra.mxu0 0.0
    %1240 = vmatprep.subr.mxu0 0.0
    %1241 = vmatpush1.msra.mxu0 0.0
    %1242 = vmatprep.subr.mxu0 0.0
    %1243 = vmatpush1.msra.mxu0 0.0
    %1244 = vmatprep.subr.mxu0 0.0
    %1245 = vmatpush1.msra.mxu0 0.0
    %1246 = vmatprep.subr.mxu0 0.0
    %1247 = vmatpush1.msra.mxu0 0.0
    %1248 = vmatprep.subr.mxu0 0.0
    %1249 = vmatpush1.msra.mxu0 0.0
    %1250 = vmatprep.subr.mxu0 0.0
    %1251 = vmatpush1.msra.mxu0 0.0
    %1252 = vmatprep.subr.mxu0 0.0
    %1253 = vmatpush1.msra.mxu0 0.0
    %1254 = vmatprep.subr.mxu0 0.0
    %1255 = vmatpush1.msra.mxu0 0.0
    %1256 = vmatprep.subr.mxu0 0.0
    %1257 = vmatpush1.msra.mxu0 0.0
    %1258 = vmatprep.subr.mxu0 0.0
    %1259 = vmatpush1.msra.mxu0 0.0
    %1260 = vmatprep.subr.mxu0 0.0
    %1261 = vmatpush1.msra.mxu0 0.0
    %1262 = vmatprep.subr.mxu0 0.0
    %1263 = vmatpush1.msra.mxu0 0.0
    %1264 = vmatprep.subr.mxu0 0.0
    %1265 = vmatpush1.msra.mxu0 0.0
    %1266 = vmatprep.subr.mxu0 0.0
    %1267 = vmatpush1.msra.mxu0 0.0
    %1268 = vmatprep.subr.mxu0 0.0
    %1269 = vmatpush1.msra.mxu0 0.0
    %1270 = vmatprep.subr.mxu0 0.0
    %1271 = vmatpush1.msra.mxu0 0.0
    %1272 = vmatprep.subr.mxu0 0.0
    %1273 = vmatpush1.msra.mxu0 0.0
    %1274 = vmatprep.subr.mxu0 0.0
    %1275 = vmatpush1.msra.mxu0 0.0
    %1276 = vmatprep.subr.mxu0 0.0
    %1277 = vmatpush1.msra.mxu0 0.0
    %1278 = vmatprep.subr.mxu0 0.0
    %1279 = vmatpush1.msra.mxu0 0.0
    %1280 = vmatprep.subr.mxu0 0.0
    %1281 = vmatpush1.msra.mxu0 0.0
    %1282 = vmatprep.subr.mxu0 0.0
    %1283 = vmatpush1.msra.mxu0 0.0
    %1284 = vmatprep.subr.mxu0 0.0
    %1285 = vmatpush1.msra.mxu0 0.0
    %1286 = vmatprep.subr.mxu0 0.0
    %1287 = vmatpush1.msra.mxu0 0.0
    %1288 = vmatprep.subr.mxu0 0.0
    %1289 = vmatpush1.msra.mxu0 0.0
    %1290 = vmatprep.subr.mxu0 0.0
    %1291 = vmatpush1.msra.mxu0 0.0
    %1292 = vmatprep.subr.mxu0 0.0
    %1293 = vmatpush1.msra.mxu0 0.0
    %1294 = vmatprep.subr.mxu0 0.0
    %1295 = vmatpush1.msra.mxu0 0.0
    %1296 = vmatprep.subr.mxu0 0.0
    %1297 = vmatpush1.msra.mxu0 0.0
    %1298 = vmatprep.mubr.f32.mxu0 0.0
    %1299 = vmatmul.mubr.f32.gmra.mrb[0].mxu0 %v240
    %v1300 = vpop.f32.mrb[0].mxu0
    %v1301 = vadd.f32 0.0, %v1300
    %v1302 = vpop.f32.mrb[0].mxu0
    %1303 = vdwg.mxu0
    %1304 = vmatprep.subr.mxu0 0.0
    %1305 = vmatpush1.msra.mxu0 %v1228
    %1306 = vmatprep.subr.mxu0 0.0
    %1307 = vmatpush1.msra.mxu0 %v1229
    %1308 = vmatprep.subr.mxu0 0.0
    %1309 = vmatpush1.msra.mxu0 %v1230
    %1310 = vmatprep.subr.mxu0 0.0
    %1311 = vmatpush1.msra.mxu0 %v1231
    %1312 = vmatprep.subr.mxu0 0.0
    %1313 = vmatpush1.msra.mxu0 0.0
    %1314 = vmatprep.subr.mxu0 0.0
    %1315 = vmatpush1.msra.mxu0 0.0
    %1316 = vmatprep.subr.mxu0 0.0
    %1317 = vmatpush1.msra.mxu0 0.0
    %1318 = vmatprep.subr.mxu0 0.0
    %1319 = vmatpush1.msra.mxu0 0.0
    %1320 = vmatprep.subr.mxu0 0.0
    %1321 = vmatpush1.msra.mxu0 0.0
    %1322 = vmatprep.subr.mxu0 0.0
    %1323 = vmatpush1.msra.mxu0 0.0
    %1324 = vmatprep.subr.mxu0 0.0
    %1325 = vmatpush1.msra.mxu0 0.0
    %1326 = vmatprep.subr.mxu0 0.0
    %1327 = vmatpush1.msra.mxu0 0.0
    %1328 = vmatprep.subr.mxu0 0.0
    %1329 = vmatpush1.msra.mxu0 0.0
    %1330 = vmatprep.subr.mxu0 0.0
    %1331 = vmatpush1.msra.mxu0 0.0
    %1332 = vmatprep.subr.mxu0 0.0
    %1333 = vmatpush1.msra.mxu0 0.0
    %1334 = vmatprep.subr.mxu0 0.0
    %1335 = vmatpush1.msra.mxu0 0.0
    %1336 = vmatprep.subr.mxu0 0.0
    %1337 = vmatpush1.msra.mxu0 0.0
    %1338 = vmatprep.subr.mxu0 0.0
    %1339 = vmatpush1.msra.mxu0 0.0
    %1340 = vmatprep.subr.mxu0 0.0
    %1341 = vmatpush1.msra.mxu0 0.0
    %1342 = vmatprep.subr.mxu0 0.0
    %1343 = vmatpush1.msra.mxu0 0.0
    %1344 = vmatprep.subr.mxu0 0.0
    %1345 = vmatpush1.msra.mxu0 0.0
    %1346 = vmatprep.subr.mxu0 0.0
    %1347 = vmatpush1.msra.mxu0 0.0
    %1348 = vmatprep.subr.mxu0 0.0
    %1349 = vmatpush1.msra.mxu0 0.0
    %1350 = vmatprep.subr.mxu0 0.0
    %1351 = vmatpush1.msra.mxu0 0.0
    %1352 = vmatprep.subr.mxu0 0.0
    %1353 = vmatpush1.msra.mxu0 0.0
    %1354 = vmatprep.subr.mxu0 0.0
    %1355 = vmatpush1.msra.mxu0 0.0
    %1356 = vmatprep.subr.mxu0 0.0
    %1357 = vmatpush1.msra.mxu0 0.0
    %1358 = vmatprep.subr.mxu0 0.0
    %1359 = vmatpush1.msra.mxu0 0.0
    %1360 = vmatprep.subr.mxu0 0.0
    %1361 = vmatpush1.msra.mxu0 0.0
    %1362 = vmatprep.subr.mxu0 0.0
    %1363 = vmatpush1.msra.mxu0 0.0
    %1364 = vmatprep.subr.mxu0 0.0
    %1365 = vmatpush1.msra.mxu0 0.0
    %1366 = vmatprep.subr.mxu0 0.0
    %1367 = vmatpush1.msra.mxu0 0.0
    %1368 = vmatprep.mubr.f32.mxu0 0.0
    %1369 = vmatmul.mubr.f32.gmra.mrb[0].mxu0 %v78
    %v1370 = vpop.f32.mrb[0].mxu0
    %v1371 = vadd.f32 %v1301, %v1370
    %v1372 = vpop.f32.mrb[0].mxu0
    %1373 = vdwg.mxu0
    %v1374 = vld [vmem:[#allocation8 + $0x11] ss:$0 sm:$0xff]
    %v1375 = vadd.f32 %v1371, %v1374
    %v1376 = vmax.f32 %v1375, 0.0
    %v1377 = vld [vmem:[#allocation7 + $0x7d0] sm:$0xff]
    %v1378 = vld [vmem:[#allocation7 + $0x7e0] sm:$0xff]
    %v1379 = vld [vmem:[#allocation7 + $0x7f0] sm:$0xff]
    %v1380 = vld [vmem:[#allocation7 + $0x800] sm:$0xff]
    %v1381 = vld [vmem:[#allocation7 + $0x810] sm:$0xff]
    %v1382 = vld [vmem:[#allocation7 + $0x820] sm:$0xff]
    %v1383 = vld [vmem:[#allocation7 + $0x830] sm:$0xff]
    %v1384 = vld [vmem:[#allocation7 + $0x840] sm:$0xff]
    %v1385 = vld [vmem:[#allocation8 + $0x12] ss:$0 sm:$0xff]
    %v1387 = vsel %vm160, %v1376, 0
    %1389 = vmatprep.subr.mxu0 0.0
    %1390 = vmatpush1.msra.mxu0 %v1377
    %1391 = vmatprep.subr.mxu0 0.0
    %1392 = vmatpush1.msra.mxu0 %v1378
    %1393 = vmatprep.subr.mxu0 0.0
    %1394 = vmatpush1.msra.mxu0 %v1379
    %1395 = vmatprep.subr.mxu0 0.0
    %1396 = vmatpush1.msra.mxu0 %v1380
    %1397 = vmatprep.subr.mxu0 0.0
    %1398 = vmatpush1.msra.mxu0 %v1381
    %1399 = vmatprep.subr.mxu0 0.0
    %1400 = vmatpush1.msra.mxu0 %v1382
    %1401 = vmatprep.subr.mxu0 0.0
    %1402 = vmatpush1.msra.mxu0 %v1383
    %1403 = vmatprep.subr.mxu0 0.0
    %1404 = vmatpush1.msra.mxu0 %v1384
    %1405 = vmatprep.subr.mxu0 0.0
    %1406 = vmatpush1.msra.mxu0 0.0
    %1407 = vmatprep.subr.mxu0 0.0
    %1408 = vmatpush1.msra.mxu0 0.0
    %1409 = vmatprep.subr.mxu0 0.0
    %1410 = vmatpush1.msra.mxu0 0.0
    %1411 = vmatprep.subr.mxu0 0.0
    %1412 = vmatpush1.msra.mxu0 0.0
    %1413 = vmatprep.subr.mxu0 0.0
    %1414 = vmatpush1.msra.mxu0 0.0
    %1415 = vmatprep.subr.mxu0 0.0
    %1416 = vmatpush1.msra.mxu0 0.0
    %1417 = vmatprep.subr.mxu0 0.0
    %1418 = vmatpush1.msra.mxu0 0.0
    %1419 = vmatprep.subr.mxu0 0.0
    %1420 = vmatpush1.msra.mxu0 0.0
    %1421 = vmatprep.subr.mxu0 0.0
    %1422 = vmatpush1.msra.mxu0 0.0
    %1423 = vmatprep.subr.mxu0 0.0
    %1424 = vmatpush1.msra.mxu0 0.0
    %1425 = vmatprep.subr.mxu0 0.0
    %1426 = vmatpush1.msra.mxu0 0.0
    %1427 = vmatprep.subr.mxu0 0.0
    %1428 = vmatpush1.msra.mxu0 0.0
    %1429 = vmatprep.subr.mxu0 0.0
    %1430 = vmatpush1.msra.mxu0 0.0
    %1431 = vmatprep.subr.mxu0 0.0
    %1432 = vmatpush1.msra.mxu0 0.0
    %1433 = vmatprep.subr.mxu0 0.0
    %1434 = vmatpush1.msra.mxu0 0.0
    %1435 = vmatprep.subr.mxu0 0.0
    %1436 = vmatpush1.msra.mxu0 0.0
    %1437 = vmatprep.subr.mxu0 0.0
    %1438 = vmatpush1.msra.mxu0 0.0
    %1439 = vmatprep.subr.mxu0 0.0
    %1440 = vmatpush1.msra.mxu0 0.0
    %1441 = vmatprep.subr.mxu0 0.0
    %1442 = vmatpush1.msra.mxu0 0.0
    %1443 = vmatprep.subr.mxu0 0.0
    %1444 = vmatpush1.msra.mxu0 0.0
    %1445 = vmatprep.subr.mxu0 0.0
    %1446 = vmatpush1.msra.mxu0 0.0
    %1447 = vmatprep.subr.mxu0 0.0
    %1448 = vmatpush1.msra.mxu0 0.0
    %1449 = vmatprep.subr.mxu0 0.0
    %1450 = vmatpush1.msra.mxu0 0.0
    %1451 = vmatprep.subr.mxu0 0.0
    %1452 = vmatpush1.msra.mxu0 0.0
    %1453 = vmatprep.mubr.f32.mxu0 0.0
    %1454 = vmatmul.mubr.f32.gmra.mrb[0].mxu0 %v1387
    %v1455 = vpop.f32.mrb[0].mxu0
    %v1456 = vadd.f32 %v1385, %v1455
    %v1457 = vpop.f32.mrb[0].mxu0
    %1458 = vdwg.mxu0
    %v1459 = vmax.f32 %v1456, 0.0
    %1461 = vrot.lane.b32.xlu0 %v1226, 8
    %v1462 = vpop.permute.xlu0 %1461
    %1465 = vrot.lane.b32.xlu0 %v1459, 16
    %v1466 = vpop.permute.xlu0 %1465
    %vm1468 = vcmask 64512
    %v1469 = vsel %vm1468, %v1227, %v1462
    %v1470 = vsel %vm238, %v1469, %v1466
    %vm1471 = vcmask 654336
    %v1472 = vsel %vm1471, %v1470, 0.0
    %1473 = vst [vmem:[#allocation10] sm:$0xff] %v1472
    // Predicated region
    $region34: #{tpu_custom_call.1} parent=1 // pred_check
      _
    $region35: #{tpu_custom_call.1} parent=1 // pred_check_branch
      %1475 = sbr.rel (0) target = $region37
    $region36: #{tpu_custom_call.1} parent=1 // pred_region
      %s1477 = ssub.s32 128, 128
      %1478 = vsyncadd [#allocation4], %s1477
      %s1480 = sshll.u32 [#allocation10], 4
      %s1481 = int_to_ptr.vmem [resolvable:$true] %s1480
      %1483 = dma.vmem_to_hbm [thread:$0]  %s1481, 128, %s4, [#allocation4]
    $region37: #{tpu_custom_call.1} parent=1 // pred_fallthru
      _
    // Predicated region
    $region38: #{tpu_custom_call.1} parent=1 // pred_check
      _
    $region39: #{tpu_custom_call.1} parent=1 // pred_check_branch
      %1485 = sbr.rel (0) target = $region41
    $region40: #{tpu_custom_call.1} parent=1 // pred_region
      %1486 = dma.done [#allocation4], 128
    $region41: #{tpu_custom_call.1} parent=1 // pred_fallthru
      _
    %1487 = vsyncpa [#allocation3], 1
    %1488 = vsyncpa [#allocation6], 1
    %1489 = vsyncpa [#allocation9], 1
    %1490 = vsyncpa [#allocation4], 1

</llo_original>
